<compile_context>
chip_gen: v6e
topology: v6e:2x2x1
jax: 0.10.0
libtpu: 0.0.40
codegen_flags: <defaults>
</compile_context>

<pallas_src>
import functools

import jax
import jax.numpy as jnp
from jax.experimental import pallas as pl
from jax.experimental.pallas import tpu as pltpu

SIG_LEN = 800                 # per-channel signal length
N_CH = 3
IN_DIM = N_CH * SIG_LEN       # 2400
CNN_OUT = 32                  # cnn_output_dim
CAT_DIM = N_CH * CNN_OUT      # 96
CAT_PAD = 128                 # lane-dense padded width of the concatenated features
MLP_HID = 32                  # hidden width of the stand-in mlp
MLP_OUT = 16                  # final embedding dim
TM_MAX = 1024                 # max batch rows per grid step (multiple of 8)


def _round_up(x, m):
    return (x + m - 1) // m * m


def _cdiv(a, b):
    return -(-a // b)


def _combined_embedding_kernel(x_ref, wbd_ref, bcat_ref,
                               wm1_ref, bm1_ref,
                               wm2_ref, bm2_ref,
                               o_ref):
    """Fused: block-diag Linear+ReLU (== 3 per-channel Linears + hstack)
       -> Linear+ReLU -> Linear."""
    # Cast the LHS tile in VMEM (cheap VPU op, hidden under the input DMA).
    # wbd's dtype selects the MXU path: f32 (exact) or bf16 (fast, f32 accumulate).
    x = x_ref[...].astype(wbd_ref.dtype)

    # First layer: one (TM, 2400) @ (2400, 128) matmul, f32 accumulation on the MXU.
    h = jnp.dot(x, wbd_ref[...], preferred_element_type=jnp.float32)
    h = jnp.maximum(h + bcat_ref[...], 0.0)          # (TM, 128), lane-dense

    # Stand-in MLP (padded rows of wm1 are zero -> exact).
    hm = jnp.dot(h, wm1_ref[...], preferred_element_type=jnp.float32)
    hm = jnp.maximum(hm + bm1_ref[...], 0.0)
    out = jnp.dot(hm, wm2_ref[...], preferred_element_type=jnp.float32) + bm2_ref[...]

    o_ref[...] = out.astype(o_ref.dtype)


def init_params(key):
    """Deterministic, PyTorch-Linear-style uniform init. Weights are (in, out)."""
    def linear(kw, kb, fan_in, fan_out):
        lim = 1.0 / jnp.sqrt(jnp.float32(fan_in))
        w = jax.random.uniform(kw, (fan_in, fan_out), jnp.float32, -lim, lim)
        b = jax.random.uniform(kb, (1, fan_out), jnp.float32, -lim, lim)
        return w, b

    ks = jax.random.split(key, 10)
    w1, b1 = linear(ks[0], ks[1], SIG_LEN, CNN_OUT)
    w2, b2 = linear(ks[2], ks[3], SIG_LEN, CNN_OUT)
    w3, b3 = linear(ks[4], ks[5], SIG_LEN, CNN_OUT)
    wm1, bm1 = linear(ks[6], ks[7], CAT_DIM, MLP_HID)
    wm2, bm2 = linear(ks[8], ks[9], MLP_HID, MLP_OUT)
    return (w1, b1, w2, b2, w3, b3, wm1, bm1, wm2, bm2)


def prepare_params(params, *, use_bf16=False):
    """One-time weight preparation (hoisted out of the forward pass).

    Builds the block-diagonal first-layer weight padded to 128 lanes:
      x @ W_bd == hstack(x1@w1, x2@w2, x3@w3) (extra 32 columns are exactly zero).
    """
    (w1, b1, w2, b2, w3, b3, wm1, bm1, wm2, bm2) = params

    wbd = jnp.zeros((IN_DIM, CAT_PAD), jnp.float32)
    for c, w in enumerate((w1, w2, w3)):
        wbd = wbd.at[c * SIG_LEN:(c + 1) * SIG_LEN,
                     c * CNN_OUT:(c + 1) * CNN_OUT].set(w)

    bcat = jnp.zeros((1, CAT_PAD), jnp.float32)
    bcat = bcat.at[:, :CAT_DIM].set(jnp.concatenate([b1, b2, b3], axis=-1))

    wm1p = jnp.zeros((CAT_PAD, MLP_HID), jnp.float32)
    wm1p = wm1p.at[:CAT_DIM, :].set(wm1)

    if use_bf16:
        # Only the big first-layer weight needs to be bf16; x is cast in-kernel,
        # accumulation stays f32.  Second/third-layer weights are tiny -> keep f32.
        wbd = wbd.astype(jnp.bfloat16)

    return (wbd, bcat, wm1p, bm1, wm2, bm2)


@jax.jit
def combined_embedding(x, prepared_params):
    """x: (..., 2400) float32  ->  (..., MLP_OUT) float32."""
    wbd, bcat, wm1, bm1, wm2, bm2 = prepared_params
    batch_shape = x.shape[:-1]
    assert x.shape[-1] == IN_DIM, "last dim must be 3*800 = 2400"

    # Contiguous (N, 2400): the (N,3,800) reshape + per-channel slicing of the PyTorch
    # forward is absorbed into the block-diagonal first-layer weight (no strided gathers).
    xf = x.reshape((-1, IN_DIM))
    n = xf.shape[0]

    # Batch tile: large (amortize ~0.35us/step overhead) but megacore-aware: for n>=16
    # force >=2 grid steps so ("parallel",) can shard the batch across both v7x cores.
    steps = _cdiv(n, TM_MAX)
    if n >= 16:
        steps = max(steps, 2)
    tm = min(TM_MAX, _round_up(_cdiv(n, steps), 8))
    grid = _cdiv(n, tm)
    # No explicit padding: the last (possibly partial) block reads garbage rows and its
    # out-of-range output rows are write-masked; safe because rows are independent.

    batch_spec = lambda shape: pl.BlockSpec(shape, lambda i: (i, 0))
    full_spec = lambda arr: pl.BlockSpec(arr.shape, lambda i: (0, 0))  # grid-invariant

    out = pl.pallas_call(
        _combined_embedding_kernel,
        out_shape=jax.ShapeDtypeStruct((n, MLP_OUT), jnp.float32),
        grid=(grid,),
        in_specs=[
            batch_spec((tm, IN_DIM)),     # single wide, lane-dense x stream
            full_spec(wbd), full_spec(bcat),
            full_spec(wm1), full_spec(bm1),
            full_spec(wm2), full_spec(bm2),
        ],
        out_specs=batch_spec((tm, MLP_OUT)),
        compiler_params=pltpu.CompilerParams(
            dimension_semantics=("parallel",),
            # f32 @ TM=1024: ~20 MB double-buffered input + ~2.5 MB weights + output.
            # Fits 32 MiB scoped VMEM on v5e/v6e/v7x (v7x physical VMEM is 64 MiB).
            vmem_limit_bytes=32 * 1024 * 1024),
    )(xf, wbd, bcat, wm1, bm1, wm2, bm2)

    return out.reshape(batch_shape + (MLP_OUT,))


def combined_embedding_ref(x, params):
    """Pure-JAX reference mirroring the PyTorch forward (per-channel form)."""
    (w1, b1, w2, b2, w3, b3, wm1, bm1, wm2, bm2) = params
    batch_shape = x.shape[:-1]
    xf = x.reshape(batch_shape + (N_CH, SIG_LEN))
    c1 = jnp.maximum(xf[..., 0, :].reshape(-1, SIG_LEN) @ w1 + b1, 0.0)
    c2 = jnp.maximum(xf[..., 1, :].reshape(-1, SIG_LEN) @ w2 + b2, 0.0)
    c3 = jnp.maximum(xf[..., 2, :].reshape(-1, SIG_LEN) @ w3 + b3, 0.0)
    cat = jnp.concatenate([c1, c2, c3], axis=-1)
    cat = cat.reshape(batch_shape + (CAT_DIM,))
    hm = jnp.maximum(cat @ wm1 + bm1, 0.0)
    return hm @ wm2 + bm2


if __name__ == "__main__":
    key = jax.random.PRNGKey(0)
    k_x, k_x2, k_p = jax.random.split(key, 3)
    params = init_params(k_p)
    prepared_f32 = prepare_params(params)                      # one-time
    prepared_bf16 = prepare_params(params, use_bf16=True)      # one-time

    # Small shape consistent with the module: batch_shape = (2, 4), features = 2400.
    x_small = jax.random.normal(k_x, (2, 4, IN_DIM), dtype=jnp.float32)
    out_small = jax.block_until_ready(combined_embedding(x_small, prepared_f32))
    ref_small = combined_embedding_ref(x_small, params)
    assert out_small.shape == (2, 4, MLP_OUT), out_small.shape
    assert jnp.allclose(out_small, ref_small, atol=1e-4, rtol=1e-4), "small-batch mismatch"

    # Larger ragged batch: exercises multi-step grid + partial (write-masked) last block.
    x_big = jax.random.normal(k_x2, (600, IN_DIM), dtype=jnp.float32)
    out_big = jax.block_until_ready(combined_embedding(x_big, prepared_f32))
    ref_big = combined_embedding_ref(x_big, params)
    assert out_big.shape == (600, MLP_OUT), out_big.shape
    assert jnp.allclose(out_big, ref_big, atol=1e-4, rtol=1e-4), "big-batch mismatch"

    # bf16 first-layer path (cast happens inside the kernel): smoke test only.
    out_bf16 = jax.block_until_ready(combined_embedding(x_big, prepared_bf16))
    assert out_bf16.shape == (600, MLP_OUT)
    assert bool(jnp.all(jnp.isfinite(out_bf16)))

    print("KERNEL_OK")
</pallas_src>

<mosaic_0001>
module attributes {stable_mosaic.version = 11 : i64} {
  func.func @_combined_embedding_kernel(%arg0: i32, %arg1: memref<8x2400xf32, #tpu.memory_space<vmem>>, %arg2: memref<2400x128xf32, #tpu.memory_space<vmem>>, %arg3: memref<1x128xf32, #tpu.memory_space<vmem>>, %arg4: memref<128x32xf32, #tpu.memory_space<vmem>>, %arg5: memref<1x32xf32, #tpu.memory_space<vmem>>, %arg6: memref<32x16xf32, #tpu.memory_space<vmem>>, %arg7: memref<1x16xf32, #tpu.memory_space<vmem>>, %arg8: memref<8x16xf32, #tpu.memory_space<vmem>>) attributes {dimension_semantics = [#tpu.dimension_semantics<parallel>], iteration_bounds = array<i64: 1>, scalar_prefetch = 0 : i64, scratch_operands = 0 : i64, tpu.core_type = #tpu.core_type<tc>, window_params = [{transform_indices = @transform_0, window_bounds = array<i64: 8, 2400>}, {pipeline_mode = #tpu.pipeline_mode<synchronous>, transform_indices = @transform_1, window_bounds = array<i64: 2400, 128>}, {pipeline_mode = #tpu.pipeline_mode<synchronous>, transform_indices = @transform_2, window_bounds = array<i64: 1, 128>}, {pipeline_mode = #tpu.pipeline_mode<synchronous>, transform_indices = @transform_3, window_bounds = array<i64: 128, 32>}, {pipeline_mode = #tpu.pipeline_mode<synchronous>, transform_indices = @transform_4, window_bounds = array<i64: 1, 32>}, {pipeline_mode = #tpu.pipeline_mode<synchronous>, transform_indices = @transform_5, window_bounds = array<i64: 32, 16>}, {pipeline_mode = #tpu.pipeline_mode<synchronous>, transform_indices = @transform_6, window_bounds = array<i64: 1, 16>}, {transform_indices = @transform_7, window_bounds = array<i64: 8, 16>}]} {
    %c0 = arith.constant 0 : index
    %c0_0 = arith.constant 0 : index
    %0 = vector.load %arg1[%c0, %c0_0] : memref<8x2400xf32, #tpu.memory_space<vmem>>, vector<8x2400xf32>
    %c0_1 = arith.constant 0 : index
    %c0_2 = arith.constant 0 : index
    %1 = vector.load %arg2[%c0_1, %c0_2] : memref<2400x128xf32, #tpu.memory_space<vmem>>, vector<2400x128xf32>
    %cst = arith.constant dense<0.000000e+00> : vector<8x128xf32>
    %2 = tpu.matmul %0, %1, %cst {dimension_numbers = #tpu.dot_dimension_numbers<[1], [0], [0], [1], [0, 0, 1, 1], [], []>} : vector<8x2400xf32>, vector<2400x128xf32>, vector<8x128xf32> -> vector<8x128xf32>
    %c0_3 = arith.constant 0 : index
    %c0_4 = arith.constant 0 : index
    %3 = vector.load %arg3[%c0_3, %c0_4] : memref<1x128xf32, #tpu.memory_space<vmem>>, vector<1x128xf32>
    %4 = vector.broadcast %3 : vector<1x128xf32> to vector<8x128xf32>
    %5 = arith.addf %2, %4 : vector<8x128xf32>
    %cst_5 = arith.constant 0.000000e+00 : f32
    %6 = vector.broadcast %cst_5 : f32 to vector<8x128xf32>
    %7 = arith.maximumf %5, %6 : vector<8x128xf32>
    %c0_6 = arith.constant 0 : index
    %c0_7 = arith.constant 0 : index
    %8 = vector.load %arg4[%c0_6, %c0_7] : memref<128x32xf32, #tpu.memory_space<vmem>>, vector<128x32xf32>
    %cst_8 = arith.constant dense<0.000000e+00> : vector<8x32xf32>
    %9 = tpu.matmul %7, %8, %cst_8 {dimension_numbers = #tpu.dot_dimension_numbers<[1], [0], [0], [1], [0, 0, 1, 1], [], []>} : vector<8x128xf32>, vector<128x32xf32>, vector<8x32xf32> -> vector<8x32xf32>
    %c0_9 = arith.constant 0 : index
    %c0_10 = arith.constant 0 : index
    %10 = vector.load %arg5[%c0_9, %c0_10] : memref<1x32xf32, #tpu.memory_space<vmem>>, vector<1x32xf32>
    %11 = vector.broadcast %10 : vector<1x32xf32> to vector<8x32xf32>
    %12 = arith.addf %9, %11 : vector<8x32xf32>
    %cst_11 = arith.constant 0.000000e+00 : f32
    %13 = vector.broadcast %cst_11 : f32 to vector<8x32xf32>
    %14 = arith.maximumf %12, %13 : vector<8x32xf32>
    %c0_12 = arith.constant 0 : index
    %c0_13 = arith.constant 0 : index
    %15 = vector.load %arg6[%c0_12, %c0_13] : memref<32x16xf32, #tpu.memory_space<vmem>>, vector<32x16xf32>
    %cst_14 = arith.constant dense<0.000000e+00> : vector<8x16xf32>
    %16 = tpu.matmul %14, %15, %cst_14 {dimension_numbers = #tpu.dot_dimension_numbers<[1], [0], [0], [1], [0, 0, 1, 1], [], []>} : vector<8x32xf32>, vector<32x16xf32>, vector<8x16xf32> -> vector<8x16xf32>
    %c0_15 = arith.constant 0 : index
    %c0_16 = arith.constant 0 : index
    %17 = vector.load %arg7[%c0_15, %c0_16] : memref<1x16xf32, #tpu.memory_space<vmem>>, vector<1x16xf32>
    %18 = vector.broadcast %17 : vector<1x16xf32> to vector<8x16xf32>
    %19 = arith.addf %16, %18 : vector<8x16xf32>
    %c0_17 = arith.constant 0 : index
    %c0_18 = arith.constant 0 : index
    %20 = vector.load %arg8[%c0_17, %c0_18] : memref<8x16xf32, #tpu.memory_space<vmem>>, vector<8x16xf32>
    tpu.vector_store %arg8[%c0_17, %c0_18], %19 {strides = array<i32>} : memref<8x16xf32, #tpu.memory_space<vmem>>, vector<8x16xf32>,
    return
  }
  func.func @transform_0(%arg0: i32) -> (i32, i32) {
    %c0_i32 = arith.constant 0 : i32
    %c0_i32_0 = arith.constant 0 : i32
    return %arg0, %c0_i32 : i32, i32
  }
  func.func @transform_1(%arg0: i32) -> (i32, i32) {
    %c0_i32 = arith.constant 0 : i32
    %c0_i32_0 = arith.constant 0 : i32
    %c0_i32_1 = arith.constant 0 : i32
    return %c0_i32, %c0_i32_0 : i32, i32
  }
  func.func @transform_2(%arg0: i32) -> (i32, i32) {
    %c0_i32 = arith.constant 0 : i32
    %c0_i32_0 = arith.constant 0 : i32
    %c0_i32_1 = arith.constant 0 : i32
    return %c0_i32, %c0_i32_0 : i32, i32
  }
  func.func @transform_3(%arg0: i32) -> (i32, i32) {
    %c0_i32 = arith.constant 0 : i32
    %c0_i32_0 = arith.constant 0 : i32
    %c0_i32_1 = arith.constant 0 : i32
    return %c0_i32, %c0_i32_0 : i32, i32
  }
  func.func @transform_4(%arg0: i32) -> (i32, i32) {
    %c0_i32 = arith.constant 0 : i32
    %c0_i32_0 = arith.constant 0 : i32
    %c0_i32_1 = arith.constant 0 : i32
    return %c0_i32, %c0_i32_0 : i32, i32
  }
  func.func @transform_5(%arg0: i32) -> (i32, i32) {
    %c0_i32 = arith.constant 0 : i32
    %c0_i32_0 = arith.constant 0 : i32
    %c0_i32_1 = arith.constant 0 : i32
    return %c0_i32, %c0_i32_0 : i32, i32
  }
  func.func @transform_6(%arg0: i32) -> (i32, i32) {
    %c0_i32 = arith.constant 0 : i32
    %c0_i32_0 = arith.constant 0 : i32
    %c0_i32_1 = arith.constant 0 : i32
    return %c0_i32, %c0_i32_0 : i32, i32
  }
  func.func @transform_7(%arg0: i32) -> (i32, i32) {
    %c0_i32 = arith.constant 0 : i32
    %c0_i32_0 = arith.constant 0 : i32
    return %arg0, %c0_i32 : i32, i32
  }
}

</mosaic_0001>

<llo_original>
// kernel: combined_embedding.1
$region0: #{combined_embedding.1}
  #allocation0 [shape = 'u32[]', space=smem, size = 0x4, offset = 0x4, fixed_abs, tag = 'smem constant byte address 0x4 - core index']
  #allocation1 [shape = 'u32[144,128]{1,0:T(1,128)}', space=vmem, size = 0x12000, scoped, tag = 'internal scratch']
  %s0 = inlined_call_operand.vmem [shape: f32[8,2400], index: 0, kind: input, shape index: {}]
  %s1 = inlined_call_operand.hbm [shape: f32[2400,128], index: 1, kind: input, shape index: {}]
  %s2 = inlined_call_operand.hbm [shape: f32[1,128], index: 2, kind: input, shape index: {}]
  %s3 = inlined_call_operand.vmem [shape: f32[128,32], index: 3, kind: input, shape index: {}]
  %s4 = inlined_call_operand.hbm [shape: f32[1,32], index: 4, kind: input, shape index: {}]
  %s5 = inlined_call_operand.vmem [shape: f32[32,16], index: 5, kind: input, shape index: {}]
  %s6 = inlined_call_operand.hbm [shape: f32[1,16], index: 6, kind: input, shape index: {}]
  %s7 = inlined_call_operand.hbm [shape: f32[8,16], index: 7, kind: output, shape index: {}]
  %s8 = sld [smem:[#allocation0]]
  $region54: #{combined_embedding.1} parent=0
    _
  %s10 = ssub.s32 1, %s8
  %s11 = scalar_select 0, %s10, %s8
  $region1: #{combined_embedding.1} parent=0
    #allocation2 [shape = 'u8[1228800]{0}', space=vmem, size = 0x12c000, scoped, tag = 'input window, operand 1, single buffered']
    #allocation3 [shape = 's32[1]{0}', space=sflag, size = 0x4, scoped, tag = 'scoped memory for combined_embedding.1']
    #allocation4 [shape = 's32[1]{0}', space=sflag, size = 0x4, scoped, tag = 'scoped memory for combined_embedding.1']
    #allocation5 [shape = 'u8[512]{0}', space=vmem, size = 0x400, scoped, tag = 'input window, operand 2, single buffered']
    #allocation6 [shape = 's32[1]{0}', space=sflag, size = 0x4, scoped, tag = 'scoped memory for combined_embedding.1']
    #allocation7 [shape = 'u8[512]{0}', space=vmem, size = 0x400, scoped, tag = 'input window, operand 4, single buffered']
    #allocation8 [shape = 'u8[512]{0}', space=vmem, size = 0x400, scoped, tag = 'input window, operand 6, single buffered']
    #allocation9 [shape = 's32[1]{0}', space=sflag, size = 0x4, scoped, tag = 'scoped memory for combined_embedding.1']
    #allocation10 [shape = 'u8[4096]{0}', space=vmem, size = 0x1000, scoped, tag = 'output window, operand 0, single buffered']
    %12 = vsyncpa [#allocation3], 0
    %13 = vsyncpa [#allocation6], 0
    %14 = vsyncpa [#allocation9], 0
    %15 = vsyncpa [#allocation4], 0
    // Predicated region
    $region2: #{combined_embedding.1} parent=1 // pred_check
      _
    $region3: #{combined_embedding.1} parent=1 // pred_check_branch
      %17 = sbr.rel (0) target = $region5
    $region4: #{combined_embedding.1} parent=1 // pred_region
      _
    $region5: #{combined_embedding.1} parent=1 // pred_fallthru
      _
    // Predicated region
    $region6: #{combined_embedding.1} parent=1 // pred_check
      _
    $region7: #{combined_embedding.1} parent=1 // pred_check_branch
      %19 = sbr.rel (0) target = $region9
    $region8: #{combined_embedding.1} parent=1 // pred_region
      %s21 = ssub.s32 38400, 38400
      %22 = vsyncadd [#allocation3], %s21
      %s23 = sshll.u32 [#allocation2], 4
      %s24 = int_to_ptr.vmem [resolvable:$true] %s23
      %29 = dma.hbm_to_vmem [thread:$0]  %s1, 38400, %s24, [#allocation3], 128, 128, 8
    $region9: #{combined_embedding.1} parent=1 // pred_fallthru
      _
    // Predicated region
    $region10: #{combined_embedding.1} parent=1 // pred_check
      _
    $region11: #{combined_embedding.1} parent=1 // pred_check_branch
      %31 = sbr.rel (0) target = $region13
    $region12: #{combined_embedding.1} parent=1 // pred_region
      %s33 = ssub.s32 16, 16
      %34 = vsyncadd [#allocation6], %s33
      %s36 = sshll.u32 [#allocation5], 4
      %s37 = int_to_ptr.vmem [resolvable:$true] %s36
      %39 = dma.hbm_to_vmem [thread:$0]  %s2, 16, %s37, [#allocation6]
    $region13: #{combined_embedding.1} parent=1 // pred_fallthru
      _
    // Predicated region
    $region14: #{combined_embedding.1} parent=1 // pred_check
      _
    $region15: #{combined_embedding.1} parent=1 // pred_check_branch
      %41 = sbr.rel (0) target = $region17
    $region16: #{combined_embedding.1} parent=1 // pred_region
      _
    $region17: #{combined_embedding.1} parent=1 // pred_fallthru
      _
    // Predicated region
    $region18: #{combined_embedding.1} parent=1 // pred_check
      _
    $region19: #{combined_embedding.1} parent=1 // pred_check_branch
      %43 = sbr.rel (0) target = $region21
    $region20: #{combined_embedding.1} parent=1 // pred_region
      %s45 = ssub.s32 16, 16
      %46 = vsyncadd [#allocation6], %s45
      %s48 = sshll.u32 [#allocation7], 4
      %s49 = int_to_ptr.vmem [resolvable:$true] %s48
      %51 = dma.hbm_to_vmem [thread:$0]  %s4, 16, %s49, [#allocation6]
    $region21: #{combined_embedding.1} parent=1 // pred_fallthru
      _
    // Predicated region
    $region22: #{combined_embedding.1} parent=1 // pred_check
      _
    $region23: #{combined_embedding.1} parent=1 // pred_check_branch
      %53 = sbr.rel (0) target = $region25
    $region24: #{combined_embedding.1} parent=1 // pred_region
      _
    $region25: #{combined_embedding.1} parent=1 // pred_fallthru
      _
    // Predicated region
    $region26: #{combined_embedding.1} parent=1 // pred_check
      _
    $region27: #{combined_embedding.1} parent=1 // pred_check_branch
      %55 = sbr.rel (0) target = $region29
    $region28: #{combined_embedding.1} parent=1 // pred_region
      %s57 = ssub.s32 16, 16
      %58 = vsyncadd [#allocation9], %s57
      %s60 = sshll.u32 [#allocation8], 4
      %s61 = int_to_ptr.vmem [resolvable:$true] %s60
      %63 = dma.hbm_to_vmem [thread:$0]  %s6, 16, %s61, [#allocation9]
    $region29: #{combined_embedding.1} parent=1 // pred_fallthru
      _
    // Predicated region
    $region30: #{combined_embedding.1} parent=1 // pred_check
      _
    $region31: #{combined_embedding.1} parent=1 // pred_check_branch
      %65 = sbr.rel (0) target = $region33
    $region32: #{combined_embedding.1} parent=1 // pred_region
      %66 = dma.done [#allocation3], 38400
    $region33: #{combined_embedding.1} parent=1 // pred_fallthru
      _
    // Predicated region
    $region34: #{combined_embedding.1} parent=1 // pred_check
      _
    $region35: #{combined_embedding.1} parent=1 // pred_check_branch
      %68 = sbr.rel (0) target = $region37
    $region36: #{combined_embedding.1} parent=1 // pred_region
      %69 = dma.done [#allocation6], 16
    $region37: #{combined_embedding.1} parent=1 // pred_fallthru
      _
    // Predicated region
    $region38: #{combined_embedding.1} parent=1 // pred_check
      _
    $region39: #{combined_embedding.1} parent=1 // pred_check_branch
      %71 = sbr.rel (0) target = $region41
    $region40: #{combined_embedding.1} parent=1 // pred_region
      %72 = dma.done [#allocation6], 16
    $region41: #{combined_embedding.1} parent=1 // pred_fallthru
      _
    // Predicated region
    $region42: #{combined_embedding.1} parent=1 // pred_check
      _
    $region43: #{combined_embedding.1} parent=1 // pred_check_branch
      %74 = sbr.rel (0) target = $region45
    $region44: #{combined_embedding.1} parent=1 // pred_region
      %75 = dma.done [#allocation9], 16
    $region45: #{combined_embedding.1} parent=1 // pred_fallthru
      _
    %v76 = vld [vmem:[%s0] sm:$0xff]
    %v77 = vld [vmem:[%s0 + $0x8] sm:$0xff]
    %v78 = vld [vmem:[%s0 + $0x10] sm:$0xff]
    %v79 = vld [vmem:[%s0 + $0x18] sm:$0xff]
    %v80 = vld [vmem:[%s0 + $0x20] sm:$0xff]
    %v81 = vld [vmem:[%s0 + $0x28] sm:$0xff]
    %v82 = vld [vmem:[%s0 + $0x30] sm:$0xff]
    %v83 = vld [vmem:[%s0 + $0x38] sm:$0xff]
    %v84 = vld [vmem:[%s0 + $0x40] sm:$0xff]
    %v85 = vld [vmem:[%s0 + $0x48] sm:$0xff]
    %v86 = vld [vmem:[%s0 + $0x50] sm:$0xff]
    %v87 = vld [vmem:[%s0 + $0x58] sm:$0xff]
    %v88 = vld [vmem:[%s0 + $0x60] sm:$0xff]
    %v89 = vld [vmem:[%s0 + $0x68] sm:$0xff]
    %v90 = vld [vmem:[%s0 + $0x70] sm:$0xff]
    %v91 = vld [vmem:[%s0 + $0x78] sm:$0xff]
    %v92 = vld [vmem:[%s0 + $0x80] sm:$0xff]
    %v93 = vld [vmem:[%s0 + $0x88] sm:$0xff]
    %v94 = vld [vmem:[%s0 + $0x90] sm:$0xff]
    %v95 = vld [vmem:[#allocation2] sm:$0xff]
    %v96 = vld [vmem:[#allocation2 + $0x8] sm:$0xff]
    %v97 = vld [vmem:[#allocation2 + $0x10] sm:$0xff]
    %v98 = vld [vmem:[#allocation2 + $0x18] sm:$0xff]
    %v99 = vld [vmem:[#allocation2 + $0x20] sm:$0xff]
    %v100 = vld [vmem:[#allocation2 + $0x28] sm:$0xff]
    %v101 = vld [vmem:[#allocation2 + $0x30] sm:$0xff]
    %v102 = vld [vmem:[#allocation2 + $0x38] sm:$0xff]
    %v103 = vld [vmem:[#allocation2 + $0x40] sm:$0xff]
    %v104 = vld [vmem:[#allocation2 + $0x48] sm:$0xff]
    %v105 = vld [vmem:[#allocation2 + $0x50] sm:$0xff]
    %v106 = vld [vmem:[#allocation2 + $0x58] sm:$0xff]
    %v107 = vld [vmem:[#allocation2 + $0x60] sm:$0xff]
    %v108 = vld [vmem:[#allocation2 + $0x68] sm:$0xff]
    %v109 = vld [vmem:[#allocation2 + $0x70] sm:$0xff]
    %v110 = vld [vmem:[#allocation2 + $0x78] sm:$0xff]
    %v111 = vld [vmem:[#allocation2 + $0x80] sm:$0xff]
    %v112 = vld [vmem:[#allocation2 + $0x88] sm:$0xff]
    %v113 = vld [vmem:[#allocation2 + $0x90] sm:$0xff]
    %v114 = vld [vmem:[#allocation2 + $0x98] sm:$0xff]
    %v115 = vld [vmem:[#allocation2 + $0xa0] sm:$0xff]
    %v116 = vld [vmem:[#allocation2 + $0xa8] sm:$0xff]
    %v117 = vld [vmem:[#allocation2 + $0xb0] sm:$0xff]
    %v118 = vld [vmem:[#allocation2 + $0xb8] sm:$0xff]
    %v119 = vld [vmem:[#allocation2 + $0xc0] sm:$0xff]
    %v120 = vld [vmem:[#allocation2 + $0xc8] sm:$0xff]
    %v121 = vld [vmem:[#allocation2 + $0xd0] sm:$0xff]
    %v122 = vld [vmem:[#allocation2 + $0xd8] sm:$0xff]
    %v123 = vld [vmem:[#allocation2 + $0xe0] sm:$0xff]
    %v124 = vld [vmem:[#allocation2 + $0xe8] sm:$0xff]
    %v125 = vld [vmem:[#allocation2 + $0xf0] sm:$0xff]
    %v126 = vld [vmem:[#allocation2 + $0xf8] sm:$0xff]
    %v127 = vld [vmem:[#allocation2 + $0x100] sm:$0xff]
    %v128 = vld [vmem:[#allocation2 + $0x108] sm:$0xff]
    %v129 = vld [vmem:[#allocation2 + $0x110] sm:$0xff]
    %v130 = vld [vmem:[#allocation2 + $0x118] sm:$0xff]
    %v131 = vld [vmem:[#allocation2 + $0x120] sm:$0xff]
    %v132 = vld [vmem:[#allocation2 + $0x128] sm:$0xff]
    %v133 = vld [vmem:[#allocation2 + $0x130] sm:$0xff]
    %v134 = vld [vmem:[#allocation2 + $0x138] sm:$0xff]
    %v135 = vld [vmem:[#allocation2 + $0x140] sm:$0xff]
    %v136 = vld [vmem:[#allocation2 + $0x148] sm:$0xff]
    %v137 = vld [vmem:[#allocation2 + $0x150] sm:$0xff]
    %v138 = vld [vmem:[#allocation2 + $0x158] sm:$0xff]
    %v139 = vld [vmem:[#allocation2 + $0x160] sm:$0xff]
    %v140 = vld [vmem:[#allocation2 + $0x168] sm:$0xff]
    %v141 = vld [vmem:[#allocation2 + $0x170] sm:$0xff]
    %v142 = vld [vmem:[#allocation2 + $0x178] sm:$0xff]
    %v143 = vld [vmem:[#allocation2 + $0x180] sm:$0xff]
    %v144 = vld [vmem:[#allocation2 + $0x188] sm:$0xff]
    %v145 = vld [vmem:[#allocation2 + $0x190] sm:$0xff]
    %v146 = vld [vmem:[#allocation2 + $0x198] sm:$0xff]
    %v147 = vld [vmem:[#allocation2 + $0x1a0] sm:$0xff]
    %v148 = vld [vmem:[#allocation2 + $0x1a8] sm:$0xff]
    %v149 = vld [vmem:[#allocation2 + $0x1b0] sm:$0xff]
    %v150 = vld [vmem:[#allocation2 + $0x1b8] sm:$0xff]
    %v151 = vld [vmem:[#allocation2 + $0x1c0] sm:$0xff]
    %v152 = vld [vmem:[#allocation2 + $0x1c8] sm:$0xff]
    %v153 = vld [vmem:[#allocation2 + $0x1d0] sm:$0xff]
    %v154 = vld [vmem:[#allocation2 + $0x1d8] sm:$0xff]
    %v155 = vld [vmem:[#allocation2 + $0x1e0] sm:$0xff]
    %v156 = vld [vmem:[#allocation2 + $0x1e8] sm:$0xff]
    %v157 = vld [vmem:[#allocation2 + $0x1f0] sm:$0xff]
    %v158 = vld [vmem:[#allocation2 + $0x1f8] sm:$0xff]
    %v159 = vld [vmem:[#allocation2 + $0x200] sm:$0xff]
    %v160 = vld [vmem:[#allocation2 + $0x208] sm:$0xff]
    %v161 = vld [vmem:[#allocation2 + $0x210] sm:$0xff]
    %v162 = vld [vmem:[#allocation2 + $0x218] sm:$0xff]
    %v163 = vld [vmem:[#allocation2 + $0x220] sm:$0xff]
    %v164 = vld [vmem:[#allocation2 + $0x228] sm:$0xff]
    %v165 = vld [vmem:[#allocation2 + $0x230] sm:$0xff]
    %v166 = vld [vmem:[#allocation2 + $0x238] sm:$0xff]
    %v167 = vld [vmem:[#allocation2 + $0x240] sm:$0xff]
    %v168 = vld [vmem:[#allocation2 + $0x248] sm:$0xff]
    %v169 = vld [vmem:[#allocation2 + $0x250] sm:$0xff]
    %v170 = vld [vmem:[#allocation2 + $0x258] sm:$0xff]
    %v171 = vld [vmem:[#allocation2 + $0x260] sm:$0xff]
    %v172 = vld [vmem:[#allocation2 + $0x268] sm:$0xff]
    %v173 = vld [vmem:[#allocation2 + $0x270] sm:$0xff]
    %v174 = vld [vmem:[#allocation2 + $0x278] sm:$0xff]
    %v175 = vld [vmem:[#allocation2 + $0x280] sm:$0xff]
    %v176 = vld [vmem:[#allocation2 + $0x288] sm:$0xff]
    %v177 = vld [vmem:[#allocation2 + $0x290] sm:$0xff]
    %v178 = vld [vmem:[#allocation2 + $0x298] sm:$0xff]
    %v179 = vld [vmem:[#allocation2 + $0x2a0] sm:$0xff]
    %v180 = vld [vmem:[#allocation2 + $0x2a8] sm:$0xff]
    %v181 = vld [vmem:[#allocation2 + $0x2b0] sm:$0xff]
    %v182 = vld [vmem:[#allocation2 + $0x2b8] sm:$0xff]
    %v183 = vld [vmem:[#allocation2 + $0x2c0] sm:$0xff]
    %v184 = vld [vmem:[#allocation2 + $0x2c8] sm:$0xff]
    %v185 = vld [vmem:[#allocation2 + $0x2d0] sm:$0xff]
    %v186 = vld [vmem:[#allocation2 + $0x2d8] sm:$0xff]
    %v187 = vld [vmem:[#allocation2 + $0x2e0] sm:$0xff]
    %v188 = vld [vmem:[#allocation2 + $0x2e8] sm:$0xff]
    %v189 = vld [vmem:[#allocation2 + $0x2f0] sm:$0xff]
    %v190 = vld [vmem:[#allocation2 + $0x2f8] sm:$0xff]
    %v191 = vld [vmem:[#allocation2 + $0x300] sm:$0xff]
    %v192 = vld [vmem:[#allocation2 + $0x308] sm:$0xff]
    %v193 = vld [vmem:[#allocation2 + $0x310] sm:$0xff]
    %v194 = vld [vmem:[#allocation2 + $0x318] sm:$0xff]
    %v195 = vld [vmem:[#allocation2 + $0x320] sm:$0xff]
    %v196 = vld [vmem:[#allocation2 + $0x328] sm:$0xff]
    %v197 = vld [vmem:[#allocation2 + $0x330] sm:$0xff]
    %v198 = vld [vmem:[#allocation2 + $0x338] sm:$0xff]
    %v199 = vld [vmem:[#allocation2 + $0x340] sm:$0xff]
    %v200 = vld [vmem:[#allocation2 + $0x348] sm:$0xff]
    %v201 = vld [vmem:[#allocation2 + $0x350] sm:$0xff]
    %v202 = vld [vmem:[#allocation2 + $0x358] sm:$0xff]
    %v203 = vld [vmem:[#allocation2 + $0x360] sm:$0xff]
    %v204 = vld [vmem:[#allocation2 + $0x368] sm:$0xff]
    %v205 = vld [vmem:[#allocation2 + $0x370] sm:$0xff]
    %v206 = vld [vmem:[#allocation2 + $0x378] sm:$0xff]
    %v207 = vld [vmem:[#allocation2 + $0x380] sm:$0xff]
    %v208 = vld [vmem:[#allocation2 + $0x388] sm:$0xff]
    %v209 = vld [vmem:[#allocation2 + $0x390] sm:$0xff]
    %v210 = vld [vmem:[#allocation2 + $0x398] sm:$0xff]
    %v211 = vld [vmem:[#allocation2 + $0x3a0] sm:$0xff]
    %v212 = vld [vmem:[#allocation2 + $0x3a8] sm:$0xff]
    %v213 = vld [vmem:[#allocation2 + $0x3b0] sm:$0xff]
    %v214 = vld [vmem:[#allocation2 + $0x3b8] sm:$0xff]
    %v215 = vld [vmem:[#allocation2 + $0x3c0] sm:$0xff]
    %v216 = vld [vmem:[#allocation2 + $0x3c8] sm:$0xff]
    %v217 = vld [vmem:[#allocation2 + $0x3d0] sm:$0xff]
    %v218 = vld [vmem:[#allocation2 + $0x3d8] sm:$0xff]
    %v219 = vld [vmem:[#allocation2 + $0x3e0] sm:$0xff]
    %v220 = vld [vmem:[#allocation2 + $0x3e8] sm:$0xff]
    %v221 = vld [vmem:[#allocation2 + $0x3f0] sm:$0xff]
    %v222 = vld [vmem:[#allocation2 + $0x3f8] sm:$0xff]
    %v223 = vld [vmem:[#allocation2 + $0x400] sm:$0xff]
    %v224 = vld [vmem:[#allocation2 + $0x408] sm:$0xff]
    %v225 = vld [vmem:[#allocation2 + $0x410] sm:$0xff]
    %v226 = vld [vmem:[#allocation2 + $0x418] sm:$0xff]
    %v227 = vld [vmem:[#allocation2 + $0x420] sm:$0xff]
    %v228 = vld [vmem:[#allocation2 + $0x428] sm:$0xff]
    %v229 = vld [vmem:[#allocation2 + $0x430] sm:$0xff]
    %v230 = vld [vmem:[#allocation2 + $0x438] sm:$0xff]
    %v231 = vld [vmem:[#allocation2 + $0x440] sm:$0xff]
    %v232 = vld [vmem:[#allocation2 + $0x448] sm:$0xff]
    %v233 = vld [vmem:[#allocation2 + $0x450] sm:$0xff]
    %v234 = vld [vmem:[#allocation2 + $0x458] sm:$0xff]
    %v235 = vld [vmem:[#allocation2 + $0x460] sm:$0xff]
    %v236 = vld [vmem:[#allocation2 + $0x468] sm:$0xff]
    %v237 = vld [vmem:[#allocation2 + $0x470] sm:$0xff]
    %v238 = vld [vmem:[#allocation2 + $0x478] sm:$0xff]
    %v239 = vld [vmem:[#allocation2 + $0x480] sm:$0xff]
    %v240 = vld [vmem:[#allocation2 + $0x488] sm:$0xff]
    %v241 = vld [vmem:[#allocation2 + $0x490] sm:$0xff]
    %v242 = vld [vmem:[#allocation2 + $0x498] sm:$0xff]
    %v243 = vld [vmem:[#allocation2 + $0x4a0] sm:$0xff]
    %v244 = vld [vmem:[#allocation2 + $0x4a8] sm:$0xff]
    %v245 = vld [vmem:[#allocation2 + $0x4b0] sm:$0xff]
    %v246 = vld [vmem:[#allocation2 + $0x4b8] sm:$0xff]
    %v247 = vld [vmem:[#allocation2 + $0x4c0] sm:$0xff]
    %v248 = vld [vmem:[#allocation2 + $0x4c8] sm:$0xff]
    %v249 = vld [vmem:[#allocation2 + $0x4d0] sm:$0xff]
    %v250 = vld [vmem:[#allocation2 + $0x4d8] sm:$0xff]
    %v251 = vld [vmem:[#allocation2 + $0x4e0] sm:$0xff]
    %v252 = vld [vmem:[#allocation2 + $0x4e8] sm:$0xff]
    %v253 = vld [vmem:[#allocation2 + $0x4f0] sm:$0xff]
    %v254 = vld [vmem:[#allocation2 + $0x4f8] sm:$0xff]
    %v255 = vld [vmem:[#allocation2 + $0x500] sm:$0xff]
    %v256 = vld [vmem:[#allocation2 + $0x508] sm:$0xff]
    %v257 = vld [vmem:[#allocation2 + $0x510] sm:$0xff]
    %v258 = vld [vmem:[#allocation2 + $0x518] sm:$0xff]
    %v259 = vld [vmem:[#allocation2 + $0x520] sm:$0xff]
    %v260 = vld [vmem:[#allocation2 + $0x528] sm:$0xff]
    %v261 = vld [vmem:[#allocation2 + $0x530] sm:$0xff]
    %v262 = vld [vmem:[#allocation2 + $0x538] sm:$0xff]
    %v263 = vld [vmem:[#allocation2 + $0x540] sm:$0xff]
    %v264 = vld [vmem:[#allocation2 + $0x548] sm:$0xff]
    %v265 = vld [vmem:[#allocation2 + $0x550] sm:$0xff]
    %v266 = vld [vmem:[#allocation2 + $0x558] sm:$0xff]
    %v267 = vld [vmem:[#allocation2 + $0x560] sm:$0xff]
    %v268 = vld [vmem:[#allocation2 + $0x568] sm:$0xff]
    %v269 = vld [vmem:[#allocation2 + $0x570] sm:$0xff]
    %v270 = vld [vmem:[#allocation2 + $0x578] sm:$0xff]
    %v271 = vld [vmem:[#allocation2 + $0x580] sm:$0xff]
    %v272 = vld [vmem:[#allocation2 + $0x588] sm:$0xff]
    %v273 = vld [vmem:[#allocation2 + $0x590] sm:$0xff]
    %v274 = vld [vmem:[#allocation2 + $0x598] sm:$0xff]
    %v275 = vld [vmem:[#allocation2 + $0x5a0] sm:$0xff]
    %v276 = vld [vmem:[#allocation2 + $0x5a8] sm:$0xff]
    %v277 = vld [vmem:[#allocation2 + $0x5b0] sm:$0xff]
    %v278 = vld [vmem:[#allocation2 + $0x5b8] sm:$0xff]
    %v279 = vld [vmem:[#allocation2 + $0x5c0] sm:$0xff]
    %v280 = vld [vmem:[#allocation2 + $0x5c8] sm:$0xff]
    %v281 = vld [vmem:[#allocation2 + $0x5d0] sm:$0xff]
    %v282 = vld [vmem:[#allocation2 + $0x5d8] sm:$0xff]
    %v283 = vld [vmem:[#allocation2 + $0x5e0] sm:$0xff]
    %v284 = vld [vmem:[#allocation2 + $0x5e8] sm:$0xff]
    %v285 = vld [vmem:[#allocation2 + $0x5f0] sm:$0xff]
    %v286 = vld [vmem:[#allocation2 + $0x5f8] sm:$0xff]
    %v287 = vld [vmem:[#allocation2 + $0x600] sm:$0xff]
    %v288 = vld [vmem:[#allocation2 + $0x608] sm:$0xff]
    %v289 = vld [vmem:[#allocation2 + $0x610] sm:$0xff]
    %v290 = vld [vmem:[#allocation2 + $0x618] sm:$0xff]
    %v291 = vld [vmem:[#allocation2 + $0x620] sm:$0xff]
    %v292 = vld [vmem:[#allocation2 + $0x628] sm:$0xff]
    %v293 = vld [vmem:[#allocation2 + $0x630] sm:$0xff]
    %v294 = vld [vmem:[#allocation2 + $0x638] sm:$0xff]
    %v295 = vld [vmem:[#allocation2 + $0x640] sm:$0xff]
    %v296 = vld [vmem:[#allocation2 + $0x648] sm:$0xff]
    %v297 = vld [vmem:[#allocation2 + $0x650] sm:$0xff]
    %v298 = vld [vmem:[#allocation2 + $0x658] sm:$0xff]
    %v299 = vld [vmem:[#allocation2 + $0x660] sm:$0xff]
    %v300 = vld [vmem:[#allocation2 + $0x668] sm:$0xff]
    %v301 = vld [vmem:[#allocation2 + $0x670] sm:$0xff]
    %v302 = vld [vmem:[#allocation2 + $0x678] sm:$0xff]
    %v303 = vld [vmem:[#allocation2 + $0x680] sm:$0xff]
    %v304 = vld [vmem:[#allocation2 + $0x688] sm:$0xff]
    %v305 = vld [vmem:[#allocation2 + $0x690] sm:$0xff]
    %v306 = vld [vmem:[#allocation2 + $0x698] sm:$0xff]
    %v307 = vld [vmem:[#allocation2 + $0x6a0] sm:$0xff]
    %v308 = vld [vmem:[#allocation2 + $0x6a8] sm:$0xff]
    %v309 = vld [vmem:[#allocation2 + $0x6b0] sm:$0xff]
    %v310 = vld [vmem:[#allocation2 + $0x6b8] sm:$0xff]
    %v311 = vld [vmem:[#allocation2 + $0x6c0] sm:$0xff]
    %v312 = vld [vmem:[#allocation2 + $0x6c8] sm:$0xff]
    %v313 = vld [vmem:[#allocation2 + $0x6d0] sm:$0xff]
    %v314 = vld [vmem:[#allocation2 + $0x6d8] sm:$0xff]
    %v315 = vld [vmem:[#allocation2 + $0x6e0] sm:$0xff]
    %v316 = vld [vmem:[#allocation2 + $0x6e8] sm:$0xff]
    %v317 = vld [vmem:[#allocation2 + $0x6f0] sm:$0xff]
    %v318 = vld [vmem:[#allocation2 + $0x6f8] sm:$0xff]
    %v319 = vld [vmem:[#allocation2 + $0x700] sm:$0xff]
    %v320 = vld [vmem:[#allocation2 + $0x708] sm:$0xff]
    %v321 = vld [vmem:[#allocation2 + $0x710] sm:$0xff]
    %v322 = vld [vmem:[#allocation2 + $0x718] sm:$0xff]
    %v323 = vld [vmem:[#allocation2 + $0x720] sm:$0xff]
    %v324 = vld [vmem:[#allocation2 + $0x728] sm:$0xff]
    %v325 = vld [vmem:[#allocation2 + $0x730] sm:$0xff]
    %v326 = vld [vmem:[#allocation2 + $0x738] sm:$0xff]
    %v327 = vld [vmem:[#allocation2 + $0x740] sm:$0xff]
    %v328 = vld [vmem:[#allocation2 + $0x748] sm:$0xff]
    %v329 = vld [vmem:[#allocation2 + $0x750] sm:$0xff]
    %v330 = vld [vmem:[#allocation2 + $0x758] sm:$0xff]
    %v331 = vld [vmem:[#allocation2 + $0x760] sm:$0xff]
    %v332 = vld [vmem:[#allocation2 + $0x768] sm:$0xff]
    %v333 = vld [vmem:[#allocation2 + $0x770] sm:$0xff]
    %v334 = vld [vmem:[#allocation2 + $0x778] sm:$0xff]
    %v335 = vld [vmem:[#allocation2 + $0x780] sm:$0xff]
    %v336 = vld [vmem:[#allocation2 + $0x788] sm:$0xff]
    %v337 = vld [vmem:[#allocation2 + $0x790] sm:$0xff]
    %v338 = vld [vmem:[#allocation2 + $0x798] sm:$0xff]
    %v339 = vld [vmem:[#allocation2 + $0x7a0] sm:$0xff]
    %v340 = vld [vmem:[#allocation2 + $0x7a8] sm:$0xff]
    %v341 = vld [vmem:[#allocation2 + $0x7b0] sm:$0xff]
    %v342 = vld [vmem:[#allocation2 + $0x7b8] sm:$0xff]
    %v343 = vld [vmem:[#allocation2 + $0x7c0] sm:$0xff]
    %v344 = vld [vmem:[#allocation2 + $0x7c8] sm:$0xff]
    %v345 = vld [vmem:[#allocation2 + $0x7d0] sm:$0xff]
    %v346 = vld [vmem:[#allocation2 + $0x7d8] sm:$0xff]
    %v347 = vld [vmem:[#allocation2 + $0x7e0] sm:$0xff]
    %v348 = vld [vmem:[#allocation2 + $0x7e8] sm:$0xff]
    %v349 = vld [vmem:[#allocation2 + $0x7f0] sm:$0xff]
    %v350 = vld [vmem:[#allocation2 + $0x7f8] sm:$0xff]
    %v351 = vld [vmem:[#allocation2 + $0x800] sm:$0xff]
    %v352 = vld [vmem:[#allocation2 + $0x808] sm:$0xff]
    %v353 = vld [vmem:[#allocation2 + $0x810] sm:$0xff]
    %v354 = vld [vmem:[#allocation2 + $0x818] sm:$0xff]
    %v355 = vld [vmem:[#allocation2 + $0x820] sm:$0xff]
    %v356 = vld [vmem:[#allocation2 + $0x828] sm:$0xff]
    %v357 = vld [vmem:[#allocation2 + $0x830] sm:$0xff]
    %v358 = vld [vmem:[#allocation2 + $0x838] sm:$0xff]
    %v359 = vld [vmem:[#allocation2 + $0x840] sm:$0xff]
    %v360 = vld [vmem:[#allocation2 + $0x848] sm:$0xff]
    %v361 = vld [vmem:[#allocation2 + $0x850] sm:$0xff]
    %v362 = vld [vmem:[#allocation2 + $0x858] sm:$0xff]
    %v363 = vld [vmem:[#allocation2 + $0x860] sm:$0xff]
    %v364 = vld [vmem:[#allocation2 + $0x868] sm:$0xff]
    %v365 = vld [vmem:[#allocation2 + $0x870] sm:$0xff]
    %v366 = vld [vmem:[#allocation2 + $0x878] sm:$0xff]
    %v367 = vld [vmem:[#allocation2 + $0x880] sm:$0xff]
    %v368 = vld [vmem:[#allocation2 + $0x888] sm:$0xff]
    %v369 = vld [vmem:[#allocation2 + $0x890] sm:$0xff]
    %v370 = vld [vmem:[#allocation2 + $0x898] sm:$0xff]
    %v371 = vld [vmem:[#allocation2 + $0x8a0] sm:$0xff]
    %v372 = vld [vmem:[#allocation2 + $0x8a8] sm:$0xff]
    %v373 = vld [vmem:[#allocation2 + $0x8b0] sm:$0xff]
    %v374 = vld [vmem:[#allocation2 + $0x8b8] sm:$0xff]
    %v375 = vld [vmem:[#allocation2 + $0x8c0] sm:$0xff]
    %v376 = vld [vmem:[#allocation2 + $0x8c8] sm:$0xff]
    %v377 = vld [vmem:[#allocation2 + $0x8d0] sm:$0xff]
    %v378 = vld [vmem:[#allocation2 + $0x8d8] sm:$0xff]
    %v379 = vld [vmem:[#allocation2 + $0x8e0] sm:$0xff]
    %v380 = vld [vmem:[#allocation2 + $0x8e8] sm:$0xff]
    %v381 = vld [vmem:[#allocation2 + $0x8f0] sm:$0xff]
    %v382 = vld [vmem:[#allocation2 + $0x8f8] sm:$0xff]
    %v383 = vld [vmem:[#allocation2 + $0x900] sm:$0xff]
    %v384 = vld [vmem:[#allocation2 + $0x908] sm:$0xff]
    %v385 = vld [vmem:[#allocation2 + $0x910] sm:$0xff]
    %v386 = vld [vmem:[#allocation2 + $0x918] sm:$0xff]
    %v387 = vld [vmem:[#allocation2 + $0x920] sm:$0xff]
    %v388 = vld [vmem:[#allocation2 + $0x928] sm:$0xff]
    %v389 = vld [vmem:[#allocation2 + $0x930] sm:$0xff]
    %v390 = vld [vmem:[#allocation2 + $0x938] sm:$0xff]
    %v391 = vld [vmem:[#allocation2 + $0x940] sm:$0xff]
    %v392 = vld [vmem:[#allocation2 + $0x948] sm:$0xff]
    %v393 = vld [vmem:[#allocation2 + $0x950] sm:$0xff]
    %v394 = vld [vmem:[#allocation2 + $0x958] sm:$0xff]
    %v395 = vld [vmem:[#allocation5] sm:$0x1]
    %v397 = vlaneseq
    %v398 = vshrl.u32 %v397, 7
    %v399 = vsub.s32 0, %v398
    %v400 = vrot.slane %v395, %v399
    %vm402 = vcmask 785408
    %v404 = vsel %vm402, %v94, 0
    %406 = vmatprep.subr.mxu0 0.0
    %407 = vmatpush1.msra.mxu0 %v110
    %408 = vmatprep.subr.mxu0 0.0
    %409 = vmatpush1.msra.mxu0 %v109
    %410 = vmatprep.subr.mxu0 0.0
    %411 = vmatpush1.msra.mxu0 %v108
    %412 = vmatprep.subr.mxu0 0.0
    %413 = vmatpush1.msra.mxu0 %v107
    %414 = vmatprep.subr.mxu0 0.0
    %415 = vmatpush1.msra.mxu0 %v106
    %416 = vmatprep.subr.mxu0 0.0
    %417 = vmatpush1.msra.mxu0 %v105
    %418 = vmatprep.subr.mxu0 0.0
    %419 = vmatpush1.msra.mxu0 %v104
    %420 = vmatprep.subr.mxu0 0.0
    %421 = vmatpush1.msra.mxu0 %v103
    %422 = vmatprep.subr.mxu0 0.0
    %423 = vmatpush1.msra.mxu0 %v102
    %424 = vmatprep.subr.mxu0 0.0
    %425 = vmatpush1.msra.mxu0 %v101
    %426 = vmatprep.subr.mxu0 0.0
    %427 = vmatpush1.msra.mxu0 %v100
    %428 = vmatprep.subr.mxu0 0.0
    %429 = vmatpush1.msra.mxu0 %v99
    %430 = vmatprep.subr.mxu0 0.0
    %431 = vmatpush1.msra.mxu0 %v98
    %432 = vmatprep.subr.mxu0 0.0
    %433 = vmatpush1.msra.mxu0 %v97
    %434 = vmatprep.subr.mxu0 0.0
    %435 = vmatpush1.msra.mxu0 %v96
    %436 = vmatprep.subr.mxu0 0.0
    %437 = vmatpush1.msra.mxu0 %v95
    %438 = vmatprep.subr.mxu0 0.0
    %439 = vmatpush2.msra.mxu0 %v126
    %440 = vmatprep.subr.mxu0 0.0
    %441 = vmatpush2.msra.mxu0 %v125
    %442 = vmatprep.subr.mxu0 0.0
    %443 = vmatpush2.msra.mxu0 %v124
    %444 = vmatprep.subr.mxu0 0.0
    %445 = vmatpush2.msra.mxu0 %v123
    %446 = vmatprep.subr.mxu0 0.0
    %447 = vmatpush2.msra.mxu0 %v122
    %448 = vmatprep.subr.mxu0 0.0
    %449 = vmatpush2.msra.mxu0 %v121
    %450 = vmatprep.subr.mxu0 0.0
    %451 = vmatpush2.msra.mxu0 %v120
    %452 = vmatprep.subr.mxu0 0.0
    %453 = vmatpush2.msra.mxu0 %v119
    %454 = vmatprep.subr.mxu0 0.0
    %455 = vmatpush2.msra.mxu0 %v118
    %456 = vmatprep.subr.mxu0 0.0
    %457 = vmatpush2.msra.mxu0 %v117
    %458 = vmatprep.subr.mxu0 0.0
    %459 = vmatpush2.msra.mxu0 %v116
    %460 = vmatprep.subr.mxu0 0.0
    %461 = vmatpush2.msra.mxu0 %v115
    %462 = vmatprep.subr.mxu0 0.0
    %463 = vmatpush2.msra.mxu0 %v114
    %464 = vmatprep.subr.mxu0 0.0
    %465 = vmatpush2.msra.mxu0 %v113
    %466 = vmatprep.subr.mxu0 0.0
    %467 = vmatpush2.msra.mxu0 %v112
    %468 = vmatprep.subr.mxu0 0.0
    %469 = vmatpush2.msra.mxu0 %v111
    %470 = vmatprep.mubr.f32.mxu0 %v77
    %471 = vmatmul.mubr.f32.gmra.mxu0 %v76
    %v472 = vpop.f32.mrf.mxu0
    %v473 = vadd.f32 %v400, %v472
    %v474 = vpop.f32.mrf.mxu0
    %475 = vdwg.mxu0
    %476 = vmatprep.subr.mxu0 0.0
    %477 = vmatpush1.msra.mxu0 %v142
    %478 = vmatprep.subr.mxu0 0.0
    %479 = vmatpush1.msra.mxu0 %v141
    %480 = vmatprep.subr.mxu0 0.0
    %481 = vmatpush1.msra.mxu0 %v140
    %482 = vmatprep.subr.mxu0 0.0
    %483 = vmatpush1.msra.mxu0 %v139
    %484 = vmatprep.subr.mxu0 0.0
    %485 = vmatpush1.msra.mxu0 %v138
    %486 = vmatprep.subr.mxu0 0.0
    %487 = vmatpush1.msra.mxu0 %v137
    %488 = vmatprep.subr.mxu0 0.0
    %489 = vmatpush1.msra.mxu0 %v136
    %490 = vmatprep.subr.mxu0 0.0
    %491 = vmatpush1.msra.mxu0 %v135
    %492 = vmatprep.subr.mxu0 0.0
    %493 = vmatpush1.msra.mxu0 %v134
    %494 = vmatprep.subr.mxu0 0.0
    %495 = vmatpush1.msra.mxu0 %v133
    %496 = vmatprep.subr.mxu0 0.0
    %497 = vmatpush1.msra.mxu0 %v132
    %498 = vmatprep.subr.mxu0 0.0
    %499 = vmatpush1.msra.mxu0 %v131
    %500 = vmatprep.subr.mxu0 0.0
    %501 = vmatpush1.msra.mxu0 %v130
    %502 = vmatprep.subr.mxu0 0.0
    %503 = vmatpush1.msra.mxu0 %v129
    %504 = vmatprep.subr.mxu0 0.0
    %505 = vmatpush1.msra.mxu0 %v128
    %506 = vmatprep.subr.mxu0 0.0
    %507 = vmatpush1.msra.mxu0 %v127
    %508 = vmatprep.subr.mxu0 0.0
    %509 = vmatpush2.msra.mxu0 %v158
    %510 = vmatprep.subr.mxu0 0.0
    %511 = vmatpush2.msra.mxu0 %v157
    %512 = vmatprep.subr.mxu0 0.0
    %513 = vmatpush2.msra.mxu0 %v156
    %514 = vmatprep.subr.mxu0 0.0
    %515 = vmatpush2.msra.mxu0 %v155
    %516 = vmatprep.subr.mxu0 0.0
    %517 = vmatpush2.msra.mxu0 %v154
    %518 = vmatprep.subr.mxu0 0.0
    %519 = vmatpush2.msra.mxu0 %v153
    %520 = vmatprep.subr.mxu0 0.0
    %521 = vmatpush2.msra.mxu0 %v152
    %522 = vmatprep.subr.mxu0 0.0
    %523 = vmatpush2.msra.mxu0 %v151
    %524 = vmatprep.subr.mxu0 0.0
    %525 = vmatpush2.msra.mxu0 %v150
    %526 = vmatprep.subr.mxu0 0.0
    %527 = vmatpush2.msra.mxu0 %v149
    %528 = vmatprep.subr.mxu0 0.0
    %529 = vmatpush2.msra.mxu0 %v148
    %530 = vmatprep.subr.mxu0 0.0
    %531 = vmatpush2.msra.mxu0 %v147
    %532 = vmatprep.subr.mxu0 0.0
    %533 = vmatpush2.msra.mxu0 %v146
    %534 = vmatprep.subr.mxu0 0.0
    %535 = vmatpush2.msra.mxu0 %v145
    %536 = vmatprep.subr.mxu0 0.0
    %537 = vmatpush2.msra.mxu0 %v144
    %538 = vmatprep.subr.mxu0 0.0
    %539 = vmatpush2.msra.mxu0 %v143
    %540 = vmatprep.mubr.f32.mxu0 %v79
    %541 = vmatmul.mubr.f32.gmra.mxu0 %v78
    %v542 = vpop.f32.mrf.mxu0
    %v543 = vadd.f32 %v473, %v542
    %v544 = vpop.f32.mrf.mxu0
    %545 = vdwg.mxu0
    %546 = vmatprep.subr.mxu0 0.0
    %547 = vmatpush1.msra.mxu0 %v174
    %548 = vmatprep.subr.mxu0 0.0
    %549 = vmatpush1.msra.mxu0 %v173
    %550 = vmatprep.subr.mxu0 0.0
    %551 = vmatpush1.msra.mxu0 %v172
    %552 = vmatprep.subr.mxu0 0.0
    %553 = vmatpush1.msra.mxu0 %v171
    %554 = vmatprep.subr.mxu0 0.0
    %555 = vmatpush1.msra.mxu0 %v170
    %556 = vmatprep.subr.mxu0 0.0
    %557 = vmatpush1.msra.mxu0 %v169
    %558 = vmatprep.subr.mxu0 0.0
    %559 = vmatpush1.msra.mxu0 %v168
    %560 = vmatprep.subr.mxu0 0.0
    %561 = vmatpush1.msra.mxu0 %v167
    %562 = vmatprep.subr.mxu0 0.0
    %563 = vmatpush1.msra.mxu0 %v166
    %564 = vmatprep.subr.mxu0 0.0
    %565 = vmatpush1.msra.mxu0 %v165
    %566 = vmatprep.subr.mxu0 0.0
    %567 = vmatpush1.msra.mxu0 %v164
    %568 = vmatprep.subr.mxu0 0.0
    %569 = vmatpush1.msra.mxu0 %v163
    %570 = vmatprep.subr.mxu0 0.0
    %571 = vmatpush1.msra.mxu0 %v162
    %572 = vmatprep.subr.mxu0 0.0
    %573 = vmatpush1.msra.mxu0 %v161
    %574 = vmatprep.subr.mxu0 0.0
    %575 = vmatpush1.msra.mxu0 %v160
    %576 = vmatprep.subr.mxu0 0.0
    %577 = vmatpush1.msra.mxu0 %v159
    %578 = vmatprep.subr.mxu0 0.0
    %579 = vmatpush2.msra.mxu0 %v190
    %580 = vmatprep.subr.mxu0 0.0
    %581 = vmatpush2.msra.mxu0 %v189
    %582 = vmatprep.subr.mxu0 0.0
    %583 = vmatpush2.msra.mxu0 %v188
    %584 = vmatprep.subr.mxu0 0.0
    %585 = vmatpush2.msra.mxu0 %v187
    %586 = vmatprep.subr.mxu0 0.0
    %587 = vmatpush2.msra.mxu0 %v186
    %588 = vmatprep.subr.mxu0 0.0
    %589 = vmatpush2.msra.mxu0 %v185
    %590 = vmatprep.subr.mxu0 0.0
    %591 = vmatpush2.msra.mxu0 %v184
    %592 = vmatprep.subr.mxu0 0.0
    %593 = vmatpush2.msra.mxu0 %v183
    %594 = vmatprep.subr.mxu0 0.0
    %595 = vmatpush2.msra.mxu0 %v182
    %596 = vmatprep.subr.mxu0 0.0
    %597 = vmatpush2.msra.mxu0 %v181
    %598 = vmatprep.subr.mxu0 0.0
    %599 = vmatpush2.msra.mxu0 %v180
    %600 = vmatprep.subr.mxu0 0.0
    %601 = vmatpush2.msra.mxu0 %v179
    %602 = vmatprep.subr.mxu0 0.0
    %603 = vmatpush2.msra.mxu0 %v178
    %604 = vmatprep.subr.mxu0 0.0
    %605 = vmatpush2.msra.mxu0 %v177
    %606 = vmatprep.subr.mxu0 0.0
    %607 = vmatpush2.msra.mxu0 %v176
    %608 = vmatprep.subr.mxu0 0.0
    %609 = vmatpush2.msra.mxu0 %v175
    %610 = vmatprep.mubr.f32.mxu0 %v81
    %611 = vmatmul.mubr.f32.gmra.mxu0 %v80
    %v612 = vpop.f32.mrf.mxu0
    %v613 = vadd.f32 %v543, %v612
    %v614 = vpop.f32.mrf.mxu0
    %615 = vdwg.mxu0
    %616 = vmatprep.subr.mxu0 0.0
    %617 = vmatpush1.msra.mxu0 %v206
    %618 = vmatprep.subr.mxu0 0.0
    %619 = vmatpush1.msra.mxu0 %v205
    %620 = vmatprep.subr.mxu0 0.0
    %621 = vmatpush1.msra.mxu0 %v204
    %622 = vmatprep.subr.mxu0 0.0
    %623 = vmatpush1.msra.mxu0 %v203
    %624 = vmatprep.subr.mxu0 0.0
    %625 = vmatpush1.msra.mxu0 %v202
    %626 = vmatprep.subr.mxu0 0.0
    %627 = vmatpush1.msra.mxu0 %v201
    %628 = vmatprep.subr.mxu0 0.0
    %629 = vmatpush1.msra.mxu0 %v200
    %630 = vmatprep.subr.mxu0 0.0
    %631 = vmatpush1.msra.mxu0 %v199
    %632 = vmatprep.subr.mxu0 0.0
    %633 = vmatpush1.msra.mxu0 %v198
    %634 = vmatprep.subr.mxu0 0.0
    %635 = vmatpush1.msra.mxu0 %v197
    %636 = vmatprep.subr.mxu0 0.0
    %637 = vmatpush1.msra.mxu0 %v196
    %638 = vmatprep.subr.mxu0 0.0
    %639 = vmatpush1.msra.mxu0 %v195
    %640 = vmatprep.subr.mxu0 0.0
    %641 = vmatpush1.msra.mxu0 %v194
    %642 = vmatprep.subr.mxu0 0.0
    %643 = vmatpush1.msra.mxu0 %v193
    %644 = vmatprep.subr.mxu0 0.0
    %645 = vmatpush1.msra.mxu0 %v192
    %646 = vmatprep.subr.mxu0 0.0
    %647 = vmatpush1.msra.mxu0 %v191
    %648 = vmatprep.subr.mxu0 0.0
    %649 = vmatpush2.msra.mxu0 %v222
    %650 = vmatprep.subr.mxu0 0.0
    %651 = vmatpush2.msra.mxu0 %v221
    %652 = vmatprep.subr.mxu0 0.0
    %653 = vmatpush2.msra.mxu0 %v220
    %654 = vmatprep.subr.mxu0 0.0
    %655 = vmatpush2.msra.mxu0 %v219
    %656 = vmatprep.subr.mxu0 0.0
    %657 = vmatpush2.msra.mxu0 %v218
    %658 = vmatprep.subr.mxu0 0.0
    %659 = vmatpush2.msra.mxu0 %v217
    %660 = vmatprep.subr.mxu0 0.0
    %661 = vmatpush2.msra.mxu0 %v216
    %662 = vmatprep.subr.mxu0 0.0
    %663 = vmatpush2.msra.mxu0 %v215
    %664 = vmatprep.subr.mxu0 0.0
    %665 = vmatpush2.msra.mxu0 %v214
    %666 = vmatprep.subr.mxu0 0.0
    %667 = vmatpush2.msra.mxu0 %v213
    %668 = vmatprep.subr.mxu0 0.0
    %669 = vmatpush2.msra.mxu0 %v212
    %670 = vmatprep.subr.mxu0 0.0
    %671 = vmatpush2.msra.mxu0 %v211
    %672 = vmatprep.subr.mxu0 0.0
    %673 = vmatpush2.msra.mxu0 %v210
    %674 = vmatprep.subr.mxu0 0.0
    %675 = vmatpush2.msra.mxu0 %v209
    %676 = vmatprep.subr.mxu0 0.0
    %677 = vmatpush2.msra.mxu0 %v208
    %678 = vmatprep.subr.mxu0 0.0
    %679 = vmatpush2.msra.mxu0 %v207
    %680 = vmatprep.mubr.f32.mxu0 %v83
    %681 = vmatmul.mubr.f32.gmra.mxu0 %v82
    %v682 = vpop.f32.mrf.mxu0
    %v683 = vadd.f32 %v613, %v682
    %v684 = vpop.f32.mrf.mxu0
    %685 = vdwg.mxu0
    %686 = vmatprep.subr.mxu0 0.0
    %687 = vmatpush1.msra.mxu0 %v238
    %688 = vmatprep.subr.mxu0 0.0
    %689 = vmatpush1.msra.mxu0 %v237
    %690 = vmatprep.subr.mxu0 0.0
    %691 = vmatpush1.msra.mxu0 %v236
    %692 = vmatprep.subr.mxu0 0.0
    %693 = vmatpush1.msra.mxu0 %v235
    %694 = vmatprep.subr.mxu0 0.0
    %695 = vmatpush1.msra.mxu0 %v234
    %696 = vmatprep.subr.mxu0 0.0
    %697 = vmatpush1.msra.mxu0 %v233
    %698 = vmatprep.subr.mxu0 0.0
    %699 = vmatpush1.msra.mxu0 %v232
    %700 = vmatprep.subr.mxu0 0.0
    %701 = vmatpush1.msra.mxu0 %v231
    %702 = vmatprep.subr.mxu0 0.0
    %703 = vmatpush1.msra.mxu0 %v230
    %704 = vmatprep.subr.mxu0 0.0
    %705 = vmatpush1.msra.mxu0 %v229
    %706 = vmatprep.subr.mxu0 0.0
    %707 = vmatpush1.msra.mxu0 %v228
    %708 = vmatprep.subr.mxu0 0.0
    %709 = vmatpush1.msra.mxu0 %v227
    %710 = vmatprep.subr.mxu0 0.0
    %711 = vmatpush1.msra.mxu0 %v226
    %712 = vmatprep.subr.mxu0 0.0
    %713 = vmatpush1.msra.mxu0 %v225
    %714 = vmatprep.subr.mxu0 0.0
    %715 = vmatpush1.msra.mxu0 %v224
    %716 = vmatprep.subr.mxu0 0.0
    %717 = vmatpush1.msra.mxu0 %v223
    %718 = vmatprep.subr.mxu0 0.0
    %719 = vmatpush2.msra.mxu0 %v254
    %720 = vmatprep.subr.mxu0 0.0
    %721 = vmatpush2.msra.mxu0 %v253
    %722 = vmatprep.subr.mxu0 0.0
    %723 = vmatpush2.msra.mxu0 %v252
    %724 = vmatprep.subr.mxu0 0.0
    %725 = vmatpush2.msra.mxu0 %v251
    %726 = vmatprep.subr.mxu0 0.0
    %727 = vmatpush2.msra.mxu0 %v250
    %728 = vmatprep.subr.mxu0 0.0
    %729 = vmatpush2.msra.mxu0 %v249
    %730 = vmatprep.subr.mxu0 0.0
    %731 = vmatpush2.msra.mxu0 %v248
    %732 = vmatprep.subr.mxu0 0.0
    %733 = vmatpush2.msra.mxu0 %v247
    %734 = vmatprep.subr.mxu0 0.0
    %735 = vmatpush2.msra.mxu0 %v246
    %736 = vmatprep.subr.mxu0 0.0
    %737 = vmatpush2.msra.mxu0 %v245
    %738 = vmatprep.subr.mxu0 0.0
    %739 = vmatpush2.msra.mxu0 %v244
    %740 = vmatprep.subr.mxu0 0.0
    %741 = vmatpush2.msra.mxu0 %v243
    %742 = vmatprep.subr.mxu0 0.0
    %743 = vmatpush2.msra.mxu0 %v242
    %744 = vmatprep.subr.mxu0 0.0
    %745 = vmatpush2.msra.mxu0 %v241
    %746 = vmatprep.subr.mxu0 0.0
    %747 = vmatpush2.msra.mxu0 %v240
    %748 = vmatprep.subr.mxu0 0.0
    %749 = vmatpush2.msra.mxu0 %v239
    %750 = vmatprep.mubr.f32.mxu0 %v85
    %751 = vmatmul.mubr.f32.gmra.mxu0 %v84
    %v752 = vpop.f32.mrf.mxu0
    %v753 = vadd.f32 %v683, %v752
    %v754 = vpop.f32.mrf.mxu0
    %755 = vdwg.mxu0
    %756 = vmatprep.subr.mxu0 0.0
    %757 = vmatpush1.msra.mxu0 %v270
    %758 = vmatprep.subr.mxu0 0.0
    %759 = vmatpush1.msra.mxu0 %v269
    %760 = vmatprep.subr.mxu0 0.0
    %761 = vmatpush1.msra.mxu0 %v268
    %762 = vmatprep.subr.mxu0 0.0
    %763 = vmatpush1.msra.mxu0 %v267
    %764 = vmatprep.subr.mxu0 0.0
    %765 = vmatpush1.msra.mxu0 %v266
    %766 = vmatprep.subr.mxu0 0.0
    %767 = vmatpush1.msra.mxu0 %v265
    %768 = vmatprep.subr.mxu0 0.0
    %769 = vmatpush1.msra.mxu0 %v264
    %770 = vmatprep.subr.mxu0 0.0
    %771 = vmatpush1.msra.mxu0 %v263
    %772 = vmatprep.subr.mxu0 0.0
    %773 = vmatpush1.msra.mxu0 %v262
    %774 = vmatprep.subr.mxu0 0.0
    %775 = vmatpush1.msra.mxu0 %v261
    %776 = vmatprep.subr.mxu0 0.0
    %777 = vmatpush1.msra.mxu0 %v260
    %778 = vmatprep.subr.mxu0 0.0
    %779 = vmatpush1.msra.mxu0 %v259
    %780 = vmatprep.subr.mxu0 0.0
    %781 = vmatpush1.msra.mxu0 %v258
    %782 = vmatprep.subr.mxu0 0.0
    %783 = vmatpush1.msra.mxu0 %v257
    %784 = vmatprep.subr.mxu0 0.0
    %785 = vmatpush1.msra.mxu0 %v256
    %786 = vmatprep.subr.mxu0 0.0
    %787 = vmatpush1.msra.mxu0 %v255
    %788 = vmatprep.subr.mxu0 0.0
    %789 = vmatpush2.msra.mxu0 %v286
    %790 = vmatprep.subr.mxu0 0.0
    %791 = vmatpush2.msra.mxu0 %v285
    %792 = vmatprep.subr.mxu0 0.0
    %793 = vmatpush2.msra.mxu0 %v284
    %794 = vmatprep.subr.mxu0 0.0
    %795 = vmatpush2.msra.mxu0 %v283
    %796 = vmatprep.subr.mxu0 0.0
    %797 = vmatpush2.msra.mxu0 %v282
    %798 = vmatprep.subr.mxu0 0.0
    %799 = vmatpush2.msra.mxu0 %v281
    %800 = vmatprep.subr.mxu0 0.0
    %801 = vmatpush2.msra.mxu0 %v280
    %802 = vmatprep.subr.mxu0 0.0
    %803 = vmatpush2.msra.mxu0 %v279
    %804 = vmatprep.subr.mxu0 0.0
    %805 = vmatpush2.msra.mxu0 %v278
    %806 = vmatprep.subr.mxu0 0.0
    %807 = vmatpush2.msra.mxu0 %v277
    %808 = vmatprep.subr.mxu0 0.0
    %809 = vmatpush2.msra.mxu0 %v276
    %810 = vmatprep.subr.mxu0 0.0
    %811 = vmatpush2.msra.mxu0 %v275
    %812 = vmatprep.subr.mxu0 0.0
    %813 = vmatpush2.msra.mxu0 %v274
    %814 = vmatprep.subr.mxu0 0.0
    %815 = vmatpush2.msra.mxu0 %v273
    %816 = vmatprep.subr.mxu0 0.0
    %817 = vmatpush2.msra.mxu0 %v272
    %818 = vmatprep.subr.mxu0 0.0
    %819 = vmatpush2.msra.mxu0 %v271
    %820 = vmatprep.mubr.f32.mxu0 %v87
    %821 = vmatmul.mubr.f32.gmra.mxu0 %v86
    %v822 = vpop.f32.mrf.mxu0
    %v823 = vadd.f32 %v753, %v822
    %v824 = vpop.f32.mrf.mxu0
    %825 = vdwg.mxu0
    %826 = vmatprep.subr.mxu0 0.0
    %827 = vmatpush1.msra.mxu0 %v302
    %828 = vmatprep.subr.mxu0 0.0
    %829 = vmatpush1.msra.mxu0 %v301
    %830 = vmatprep.subr.mxu0 0.0
    %831 = vmatpush1.msra.mxu0 %v300
    %832 = vmatprep.subr.mxu0 0.0
    %833 = vmatpush1.msra.mxu0 %v299
    %834 = vmatprep.subr.mxu0 0.0
    %835 = vmatpush1.msra.mxu0 %v298
    %836 = vmatprep.subr.mxu0 0.0
    %837 = vmatpush1.msra.mxu0 %v297
    %838 = vmatprep.subr.mxu0 0.0
    %839 = vmatpush1.msra.mxu0 %v296
    %840 = vmatprep.subr.mxu0 0.0
    %841 = vmatpush1.msra.mxu0 %v295
    %842 = vmatprep.subr.mxu0 0.0
    %843 = vmatpush1.msra.mxu0 %v294
    %844 = vmatprep.subr.mxu0 0.0
    %845 = vmatpush1.msra.mxu0 %v293
    %846 = vmatprep.subr.mxu0 0.0
    %847 = vmatpush1.msra.mxu0 %v292
    %848 = vmatprep.subr.mxu0 0.0
    %849 = vmatpush1.msra.mxu0 %v291
    %850 = vmatprep.subr.mxu0 0.0
    %851 = vmatpush1.msra.mxu0 %v290
    %852 = vmatprep.subr.mxu0 0.0
    %853 = vmatpush1.msra.mxu0 %v289
    %854 = vmatprep.subr.mxu0 0.0
    %855 = vmatpush1.msra.mxu0 %v288
    %856 = vmatprep.subr.mxu0 0.0
    %857 = vmatpush1.msra.mxu0 %v287
    %858 = vmatprep.subr.mxu0 0.0
    %859 = vmatpush2.msra.mxu0 %v318
    %860 = vmatprep.subr.mxu0 0.0
    %861 = vmatpush2.msra.mxu0 %v317
    %862 = vmatprep.subr.mxu0 0.0
    %863 = vmatpush2.msra.mxu0 %v316
    %864 = vmatprep.subr.mxu0 0.0
    %865 = vmatpush2.msra.mxu0 %v315
    %866 = vmatprep.subr.mxu0 0.0
    %867 = vmatpush2.msra.mxu0 %v314
    %868 = vmatprep.subr.mxu0 0.0
    %869 = vmatpush2.msra.mxu0 %v313
    %870 = vmatprep.subr.mxu0 0.0
    %871 = vmatpush2.msra.mxu0 %v312
    %872 = vmatprep.subr.mxu0 0.0
    %873 = vmatpush2.msra.mxu0 %v311
    %874 = vmatprep.subr.mxu0 0.0
    %875 = vmatpush2.msra.mxu0 %v310
    %876 = vmatprep.subr.mxu0 0.0
    %877 = vmatpush2.msra.mxu0 %v309
    %878 = vmatprep.subr.mxu0 0.0
    %879 = vmatpush2.msra.mxu0 %v308
    %880 = vmatprep.subr.mxu0 0.0
    %881 = vmatpush2.msra.mxu0 %v307
    %882 = vmatprep.subr.mxu0 0.0
    %883 = vmatpush2.msra.mxu0 %v306
    %884 = vmatprep.subr.mxu0 0.0
    %885 = vmatpush2.msra.mxu0 %v305
    %886 = vmatprep.subr.mxu0 0.0
    %887 = vmatpush2.msra.mxu0 %v304
    %888 = vmatprep.subr.mxu0 0.0
    %889 = vmatpush2.msra.mxu0 %v303
    %890 = vmatprep.mubr.f32.mxu0 %v89
    %891 = vmatmul.mubr.f32.gmra.mxu0 %v88
    %v892 = vpop.f32.mrf.mxu0
    %v893 = vadd.f32 %v823, %v892
    %v894 = vpop.f32.mrf.mxu0
    %895 = vdwg.mxu0
    %896 = vmatprep.subr.mxu0 0.0
    %897 = vmatpush1.msra.mxu0 %v334
    %898 = vmatprep.subr.mxu0 0.0
    %899 = vmatpush1.msra.mxu0 %v333
    %900 = vmatprep.subr.mxu0 0.0
    %901 = vmatpush1.msra.mxu0 %v332
    %902 = vmatprep.subr.mxu0 0.0
    %903 = vmatpush1.msra.mxu0 %v331
    %904 = vmatprep.subr.mxu0 0.0
    %905 = vmatpush1.msra.mxu0 %v330
    %906 = vmatprep.subr.mxu0 0.0
    %907 = vmatpush1.msra.mxu0 %v329
    %908 = vmatprep.subr.mxu0 0.0
    %909 = vmatpush1.msra.mxu0 %v328
    %910 = vmatprep.subr.mxu0 0.0
    %911 = vmatpush1.msra.mxu0 %v327
    %912 = vmatprep.subr.mxu0 0.0
    %913 = vmatpush1.msra.mxu0 %v326
    %914 = vmatprep.subr.mxu0 0.0
    %915 = vmatpush1.msra.mxu0 %v325
    %916 = vmatprep.subr.mxu0 0.0
    %917 = vmatpush1.msra.mxu0 %v324
    %918 = vmatprep.subr.mxu0 0.0
    %919 = vmatpush1.msra.mxu0 %v323
    %920 = vmatprep.subr.mxu0 0.0
    %921 = vmatpush1.msra.mxu0 %v322
    %922 = vmatprep.subr.mxu0 0.0
    %923 = vmatpush1.msra.mxu0 %v321
    %924 = vmatprep.subr.mxu0 0.0
    %925 = vmatpush1.msra.mxu0 %v320
    %926 = vmatprep.subr.mxu0 0.0
    %927 = vmatpush1.msra.mxu0 %v319
    %928 = vmatprep.subr.mxu0 0.0
    %929 = vmatpush2.msra.mxu0 %v350
    %930 = vmatprep.subr.mxu0 0.0
    %931 = vmatpush2.msra.mxu0 %v349
    %932 = vmatprep.subr.mxu0 0.0
    %933 = vmatpush2.msra.mxu0 %v348
    %934 = vmatprep.subr.mxu0 0.0
    %935 = vmatpush2.msra.mxu0 %v347
    %936 = vmatprep.subr.mxu0 0.0
    %937 = vmatpush2.msra.mxu0 %v346
    %938 = vmatprep.subr.mxu0 0.0
    %939 = vmatpush2.msra.mxu0 %v345
    %940 = vmatprep.subr.mxu0 0.0
    %941 = vmatpush2.msra.mxu0 %v344
    %942 = vmatprep.subr.mxu0 0.0
    %943 = vmatpush2.msra.mxu0 %v343
    %944 = vmatprep.subr.mxu0 0.0
    %945 = vmatpush2.msra.mxu0 %v342
    %946 = vmatprep.subr.mxu0 0.0
    %947 = vmatpush2.msra.mxu0 %v341
    %948 = vmatprep.subr.mxu0 0.0
    %949 = vmatpush2.msra.mxu0 %v340
    %950 = vmatprep.subr.mxu0 0.0
    %951 = vmatpush2.msra.mxu0 %v339
    %952 = vmatprep.subr.mxu0 0.0
    %953 = vmatpush2.msra.mxu0 %v338
    %954 = vmatprep.subr.mxu0 0.0
    %955 = vmatpush2.msra.mxu0 %v337
    %956 = vmatprep.subr.mxu0 0.0
    %957 = vmatpush2.msra.mxu0 %v336
    %958 = vmatprep.subr.mxu0 0.0
    %959 = vmatpush2.msra.mxu0 %v335
    %960 = vmatprep.mubr.f32.mxu0 %v91
    %961 = vmatmul.mubr.f32.gmra.mxu0 %v90
    %v962 = vpop.f32.mrf.mxu0
    %v963 = vadd.f32 %v893, %v962
    %v964 = vpop.f32.mrf.mxu0
    %965 = vdwg.mxu0
    %966 = vmatprep.subr.mxu0 0.0
    %967 = vmatpush1.msra.mxu0 %v366
    %968 = vmatprep.subr.mxu0 0.0
    %969 = vmatpush1.msra.mxu0 %v365
    %970 = vmatprep.subr.mxu0 0.0
    %971 = vmatpush1.msra.mxu0 %v364
    %972 = vmatprep.subr.mxu0 0.0
    %973 = vmatpush1.msra.mxu0 %v363
    %974 = vmatprep.subr.mxu0 0.0
    %975 = vmatpush1.msra.mxu0 %v362
    %976 = vmatprep.subr.mxu0 0.0
    %977 = vmatpush1.msra.mxu0 %v361
    %978 = vmatprep.subr.mxu0 0.0
    %979 = vmatpush1.msra.mxu0 %v360
    %980 = vmatprep.subr.mxu0 0.0
    %981 = vmatpush1.msra.mxu0 %v359
    %982 = vmatprep.subr.mxu0 0.0
    %983 = vmatpush1.msra.mxu0 %v358
    %984 = vmatprep.subr.mxu0 0.0
    %985 = vmatpush1.msra.mxu0 %v357
    %986 = vmatprep.subr.mxu0 0.0
    %987 = vmatpush1.msra.mxu0 %v356
    %988 = vmatprep.subr.mxu0 0.0
    %989 = vmatpush1.msra.mxu0 %v355
    %990 = vmatprep.subr.mxu0 0.0
    %991 = vmatpush1.msra.mxu0 %v354
    %992 = vmatprep.subr.mxu0 0.0
    %993 = vmatpush1.msra.mxu0 %v353
    %994 = vmatprep.subr.mxu0 0.0
    %995 = vmatpush1.msra.mxu0 %v352
    %996 = vmatprep.subr.mxu0 0.0
    %997 = vmatpush1.msra.mxu0 %v351
    %998 = vmatprep.subr.mxu0 0.0
    %999 = vmatpush2.msra.mxu0 %v382
    %1000 = vmatprep.subr.mxu0 0.0
    %1001 = vmatpush2.msra.mxu0 %v381
    %1002 = vmatprep.subr.mxu0 0.0
    %1003 = vmatpush2.msra.mxu0 %v380
    %1004 = vmatprep.subr.mxu0 0.0
    %1005 = vmatpush2.msra.mxu0 %v379
    %1006 = vmatprep.subr.mxu0 0.0
    %1007 = vmatpush2.msra.mxu0 %v378
    %1008 = vmatprep.subr.mxu0 0.0
    %1009 = vmatpush2.msra.mxu0 %v377
    %1010 = vmatprep.subr.mxu0 0.0
    %1011 = vmatpush2.msra.mxu0 %v376
    %1012 = vmatprep.subr.mxu0 0.0
    %1013 = vmatpush2.msra.mxu0 %v375
    %1014 = vmatprep.subr.mxu0 0.0
    %1015 = vmatpush2.msra.mxu0 %v374
    %1016 = vmatprep.subr.mxu0 0.0
    %1017 = vmatpush2.msra.mxu0 %v373
    %1018 = vmatprep.subr.mxu0 0.0
    %1019 = vmatpush2.msra.mxu0 %v372
    %1020 = vmatprep.subr.mxu0 0.0
    %1021 = vmatpush2.msra.mxu0 %v371
    %1022 = vmatprep.subr.mxu0 0.0
    %1023 = vmatpush2.msra.mxu0 %v370
    %1024 = vmatprep.subr.mxu0 0.0
    %1025 = vmatpush2.msra.mxu0 %v369
    %1026 = vmatprep.subr.mxu0 0.0
    %1027 = vmatpush2.msra.mxu0 %v368
    %1028 = vmatprep.subr.mxu0 0.0
    %1029 = vmatpush2.msra.mxu0 %v367
    %1030 = vmatprep.mubr.f32.mxu0 %v93
    %1031 = vmatmul.mubr.f32.gmra.mxu0 %v92
    %v1032 = vpop.f32.mrf.mxu0
    %v1033 = vadd.f32 %v963, %v1032
    %v1034 = vpop.f32.mrf.mxu0
    %1035 = vdwg.mxu0
    %1036 = vmatprep.subr.mxu0 0.0
    %1037 = vmatpush1.msra.mxu0 0.0
    %1038 = vmatprep.subr.mxu0 0.0
    %1039 = vmatpush1.msra.mxu0 0.0
    %1040 = vmatprep.subr.mxu0 0.0
    %1041 = vmatpush1.msra.mxu0 0.0
    %1042 = vmatprep.subr.mxu0 0.0
    %1043 = vmatpush1.msra.mxu0 0.0
    %1044 = vmatprep.subr.mxu0 0.0
    %1045 = vmatpush1.msra.mxu0 %v394
    %1046 = vmatprep.subr.mxu0 0.0
    %1047 = vmatpush1.msra.mxu0 %v393
    %1048 = vmatprep.subr.mxu0 0.0
    %1049 = vmatpush1.msra.mxu0 %v392
    %1050 = vmatprep.subr.mxu0 0.0
    %1051 = vmatpush1.msra.mxu0 %v391
    %1052 = vmatprep.subr.mxu0 0.0
    %1053 = vmatpush1.msra.mxu0 %v390
    %1054 = vmatprep.subr.mxu0 0.0
    %1055 = vmatpush1.msra.mxu0 %v389
    %1056 = vmatprep.subr.mxu0 0.0
    %1057 = vmatpush1.msra.mxu0 %v388
    %1058 = vmatprep.subr.mxu0 0.0
    %1059 = vmatpush1.msra.mxu0 %v387
    %1060 = vmatprep.subr.mxu0 0.0
    %1061 = vmatpush1.msra.mxu0 %v386
    %1062 = vmatprep.subr.mxu0 0.0
    %1063 = vmatpush1.msra.mxu0 %v385
    %1064 = vmatprep.subr.mxu0 0.0
    %1065 = vmatpush1.msra.mxu0 %v384
    %1066 = vmatprep.subr.mxu0 0.0
    %1067 = vmatpush1.msra.mxu0 %v383
    %1068 = vmatprep.subr.mxu0 0.0
    %1069 = vmatpush2.msra.mxu0 0.0
    %1070 = vmatprep.subr.mxu0 0.0
    %1071 = vmatpush2.msra.mxu0 0.0
    %1072 = vmatprep.subr.mxu0 0.0
    %1073 = vmatpush2.msra.mxu0 0.0
    %1074 = vmatprep.subr.mxu0 0.0
    %1075 = vmatpush2.msra.mxu0 0.0
    %1076 = vmatprep.subr.mxu0 0.0
    %1077 = vmatpush2.msra.mxu0 0.0
    %1078 = vmatprep.subr.mxu0 0.0
    %1079 = vmatpush2.msra.mxu0 0.0
    %1080 = vmatprep.subr.mxu0 0.0
    %1081 = vmatpush2.msra.mxu0 0.0
    %1082 = vmatprep.subr.mxu0 0.0
    %1083 = vmatpush2.msra.mxu0 0.0
    %1084 = vmatprep.subr.mxu0 0.0
    %1085 = vmatpush2.msra.mxu0 0.0
    %1086 = vmatprep.subr.mxu0 0.0
    %1087 = vmatpush2.msra.mxu0 0.0
    %1088 = vmatprep.subr.mxu0 0.0
    %1089 = vmatpush2.msra.mxu0 0.0
    %1090 = vmatprep.subr.mxu0 0.0
    %1091 = vmatpush2.msra.mxu0 0.0
    %1092 = vmatprep.subr.mxu0 0.0
    %1093 = vmatpush2.msra.mxu0 0.0
    %1094 = vmatprep.subr.mxu0 0.0
    %1095 = vmatpush2.msra.mxu0 0.0
    %1096 = vmatprep.subr.mxu0 0.0
    %1097 = vmatpush2.msra.mxu0 0.0
    %1098 = vmatprep.subr.mxu0 0.0
    %1099 = vmatpush2.msra.mxu0 0.0
    %1100 = vmatprep.mubr.f32.mxu0 0.0
    %1101 = vmatmul.mubr.f32.gmra.mxu0 %v404
    %v1102 = vpop.f32.mrf.mxu0
    %v1103 = vadd.f32 %v1033, %v1102
    %v1104 = vpop.f32.mrf.mxu0
    %1105 = vdwg.mxu0
    %v1106 = vmax.f32 %v1103, 0.0
    %v1107 = vld [vmem:[%s3] sm:$0xff]
    %v1108 = vld [vmem:[%s3 + $0x8] sm:$0xff]
    %v1109 = vld [vmem:[%s3 + $0x10] sm:$0xff]
    %v1110 = vld [vmem:[%s3 + $0x18] sm:$0xff]
    %v1111 = vld [vmem:[%s3 + $0x20] sm:$0xff]
    %v1112 = vld [vmem:[%s3 + $0x28] sm:$0xff]
    %v1113 = vld [vmem:[%s3 + $0x30] sm:$0xff]
    %v1114 = vld [vmem:[%s3 + $0x38] sm:$0xff]
    %v1115 = vld [vmem:[%s3 + $0x40] sm:$0xff]
    %v1116 = vld [vmem:[%s3 + $0x48] sm:$0xff]
    %v1117 = vld [vmem:[%s3 + $0x50] sm:$0xff]
    %v1118 = vld [vmem:[%s3 + $0x58] sm:$0xff]
    %v1119 = vld [vmem:[%s3 + $0x60] sm:$0xff]
    %v1120 = vld [vmem:[%s3 + $0x68] sm:$0xff]
    %v1121 = vld [vmem:[%s3 + $0x70] sm:$0xff]
    %v1122 = vld [vmem:[%s3 + $0x78] sm:$0xff]
    %v1123 = vld [vmem:[#allocation7] sm:$0x1]
    %v1125 = vlaneseq
    %v1126 = vshrl.u32 %v1125, 7
    %v1127 = vsub.s32 0, %v1126
    %v1128 = vrot.slane %v1123, %v1127
    %1130 = vmatprep.subr.mxu0 0.0
    %1131 = vmatpush1.msra.mxu0 %v1122
    %1132 = vmatprep.subr.mxu0 0.0
    %1133 = vmatpush1.msra.mxu0 %v1121
    %1134 = vmatprep.subr.mxu0 0.0
    %1135 = vmatpush1.msra.mxu0 %v1120
    %1136 = vmatprep.subr.mxu0 0.0
    %1137 = vmatpush1.msra.mxu0 %v1119
    %1138 = vmatprep.subr.mxu0 0.0
    %1139 = vmatpush1.msra.mxu0 %v1118
    %1140 = vmatprep.subr.mxu0 0.0
    %1141 = vmatpush1.msra.mxu0 %v1117
    %1142 = vmatprep.subr.mxu0 0.0
    %1143 = vmatpush1.msra.mxu0 %v1116
    %1144 = vmatprep.subr.mxu0 0.0
    %1145 = vmatpush1.msra.mxu0 %v1115
    %1146 = vmatprep.subr.mxu0 0.0
    %1147 = vmatpush1.msra.mxu0 %v1114
    %1148 = vmatprep.subr.mxu0 0.0
    %1149 = vmatpush1.msra.mxu0 %v1113
    %1150 = vmatprep.subr.mxu0 0.0
    %1151 = vmatpush1.msra.mxu0 %v1112
    %1152 = vmatprep.subr.mxu0 0.0
    %1153 = vmatpush1.msra.mxu0 %v1111
    %1154 = vmatprep.subr.mxu0 0.0
    %1155 = vmatpush1.msra.mxu0 %v1110
    %1156 = vmatprep.subr.mxu0 0.0
    %1157 = vmatpush1.msra.mxu0 %v1109
    %1158 = vmatprep.subr.mxu0 0.0
    %1159 = vmatpush1.msra.mxu0 %v1108
    %1160 = vmatprep.subr.mxu0 0.0
    %1161 = vmatpush1.msra.mxu0 %v1107
    %1162 = vmatprep.subr.mxu0 0.0
    %1163 = vmatpush2.msra.mxu0 0.0
    %1164 = vmatprep.subr.mxu0 0.0
    %1165 = vmatpush2.msra.mxu0 0.0
    %1166 = vmatprep.subr.mxu0 0.0
    %1167 = vmatpush2.msra.mxu0 0.0
    %1168 = vmatprep.subr.mxu0 0.0
    %1169 = vmatpush2.msra.mxu0 0.0
    %1170 = vmatprep.subr.mxu0 0.0
    %1171 = vmatpush2.msra.mxu0 0.0
    %1172 = vmatprep.subr.mxu0 0.0
    %1173 = vmatpush2.msra.mxu0 0.0
    %1174 = vmatprep.subr.mxu0 0.0
    %1175 = vmatpush2.msra.mxu0 0.0
    %1176 = vmatprep.subr.mxu0 0.0
    %1177 = vmatpush2.msra.mxu0 0.0
    %1178 = vmatprep.subr.mxu0 0.0
    %1179 = vmatpush2.msra.mxu0 0.0
    %1180 = vmatprep.subr.mxu0 0.0
    %1181 = vmatpush2.msra.mxu0 0.0
    %1182 = vmatprep.subr.mxu0 0.0
    %1183 = vmatpush2.msra.mxu0 0.0
    %1184 = vmatprep.subr.mxu0 0.0
    %1185 = vmatpush2.msra.mxu0 0.0
    %1186 = vmatprep.subr.mxu0 0.0
    %1187 = vmatpush2.msra.mxu0 0.0
    %1188 = vmatprep.subr.mxu0 0.0
    %1189 = vmatpush2.msra.mxu0 0.0
    %1190 = vmatprep.subr.mxu0 0.0
    %1191 = vmatpush2.msra.mxu0 0.0
    %1192 = vmatprep.subr.mxu0 0.0
    %1193 = vmatpush2.msra.mxu0 0.0
    %1194 = vmatprep.mubr.f32.mxu0 0.0
    %1195 = vmatmul.mubr.f32.gmra.mxu0 %v1106
    %v1196 = vpop.f32.mrf.mxu0
    %v1197 = vadd.f32 %v1128, %v1196
    %v1198 = vpop.f32.mrf.mxu0
    %1199 = vdwg.mxu0
    %v1200 = vmax.f32 %v1197, 0.0
    %v1201 = vld [vmem:[%s5] sm:$0xff]
    %v1202 = vld [vmem:[%s5 + $0x8] sm:$0xff]
    %v1203 = vld [vmem:[%s5 + $0x10] sm:$0xff]
    %v1204 = vld [vmem:[%s5 + $0x18] sm:$0xff]
    %v1205 = vld [vmem:[#allocation8] sm:$0x1]
    %v1207 = vlaneseq
    %v1208 = vshrl.u32 %v1207, 7
    %v1209 = vsub.s32 0, %v1208
    %v1210 = vrot.slane %v1205, %v1209
    %vm1212 = vcmask 261120
    %v1214 = vsel %vm1212, %v1200, 0
    %1216 = vmatprep.subr.mxu0 0.0
    %1217 = vmatpush1.msra.mxu0 0.0
    %1218 = vmatprep.subr.mxu0 0.0
    %1219 = vmatpush1.msra.mxu0 0.0
    %1220 = vmatprep.subr.mxu0 0.0
    %1221 = vmatpush1.msra.mxu0 0.0
    %1222 = vmatprep.subr.mxu0 0.0
    %1223 = vmatpush1.msra.mxu0 0.0
    %1224 = vmatprep.subr.mxu0 0.0
    %1225 = vmatpush1.msra.mxu0 0.0
    %1226 = vmatprep.subr.mxu0 0.0
    %1227 = vmatpush1.msra.mxu0 0.0
    %1228 = vmatprep.subr.mxu0 0.0
    %1229 = vmatpush1.msra.mxu0 0.0
    %1230 = vmatprep.subr.mxu0 0.0
    %1231 = vmatpush1.msra.mxu0 0.0
    %1232 = vmatprep.subr.mxu0 0.0
    %1233 = vmatpush1.msra.mxu0 0.0
    %1234 = vmatprep.subr.mxu0 0.0
    %1235 = vmatpush1.msra.mxu0 0.0
    %1236 = vmatprep.subr.mxu0 0.0
    %1237 = vmatpush1.msra.mxu0 0.0
    %1238 = vmatprep.subr.mxu0 0.0
    %1239 = vmatpush1.msra.mxu0 0.0
    %1240 = vmatprep.subr.mxu0 0.0
    %1241 = vmatpush1.msra.mxu0 %v1204
    %1242 = vmatprep.subr.mxu0 0.0
    %1243 = vmatpush1.msra.mxu0 %v1203
    %1244 = vmatprep.subr.mxu0 0.0
    %1245 = vmatpush1.msra.mxu0 %v1202
    %1246 = vmatprep.subr.mxu0 0.0
    %1247 = vmatpush1.msra.mxu0 %v1201
    %1248 = vmatprep.subr.mxu0 0.0
    %1249 = vmatpush2.msra.mxu0 0.0
    %1250 = vmatprep.subr.mxu0 0.0
    %1251 = vmatpush2.msra.mxu0 0.0
    %1252 = vmatprep.subr.mxu0 0.0
    %1253 = vmatpush2.msra.mxu0 0.0
    %1254 = vmatprep.subr.mxu0 0.0
    %1255 = vmatpush2.msra.mxu0 0.0
    %1256 = vmatprep.subr.mxu0 0.0
    %1257 = vmatpush2.msra.mxu0 0.0
    %1258 = vmatprep.subr.mxu0 0.0
    %1259 = vmatpush2.msra.mxu0 0.0
    %1260 = vmatprep.subr.mxu0 0.0
    %1261 = vmatpush2.msra.mxu0 0.0
    %1262 = vmatprep.subr.mxu0 0.0
    %1263 = vmatpush2.msra.mxu0 0.0
    %1264 = vmatprep.subr.mxu0 0.0
    %1265 = vmatpush2.msra.mxu0 0.0
    %1266 = vmatprep.subr.mxu0 0.0
    %1267 = vmatpush2.msra.mxu0 0.0
    %1268 = vmatprep.subr.mxu0 0.0
    %1269 = vmatpush2.msra.mxu0 0.0
    %1270 = vmatprep.subr.mxu0 0.0
    %1271 = vmatpush2.msra.mxu0 0.0
    %1272 = vmatprep.subr.mxu0 0.0
    %1273 = vmatpush2.msra.mxu0 0.0
    %1274 = vmatprep.subr.mxu0 0.0
    %1275 = vmatpush2.msra.mxu0 0.0
    %1276 = vmatprep.subr.mxu0 0.0
    %1277 = vmatpush2.msra.mxu0 0.0
    %1278 = vmatprep.subr.mxu0 0.0
    %1279 = vmatpush2.msra.mxu0 0.0
    %1280 = vmatprep.mubr.f32.mxu0 0.0
    %1281 = vmatmul.mubr.f32.gmra.mxu0 %v1214
    %v1282 = vpop.f32.mrf.mxu0
    %v1283 = vadd.f32 %v1210, %v1282
    %v1284 = vpop.f32.mrf.mxu0
    %1285 = vdwg.mxu0
    %vm1286 = vcmask 130048
    %1287 = vst.msk [vmem:[#allocation10] sm:$0xff] %vm1286, %v1283
    // Predicated region
    $region46: #{combined_embedding.1} parent=1 // pred_check
      _
    $region47: #{combined_embedding.1} parent=1 // pred_check_branch
      %1289 = sbr.rel (0) target = $region49
    $region48: #{combined_embedding.1} parent=1 // pred_region
      %s1291 = ssub.s32 128, 128
      %1292 = vsyncadd [#allocation4], %s1291
      %s1294 = sshll.u32 [#allocation10], 4
      %s1295 = int_to_ptr.vmem [resolvable:$true] %s1294
      %1297 = dma.vmem_to_hbm [thread:$0]  %s1295, 128, %s7, [#allocation4]
    $region49: #{combined_embedding.1} parent=1 // pred_fallthru
      _
    // Predicated region
    $region50: #{combined_embedding.1} parent=1 // pred_check
      _
    $region51: #{combined_embedding.1} parent=1 // pred_check_branch
      %1299 = sbr.rel (0) target = $region53
    $region52: #{combined_embedding.1} parent=1 // pred_region
      %1300 = dma.done [#allocation4], 128
    $region53: #{combined_embedding.1} parent=1 // pred_fallthru
      _
    %1301 = vsyncpa [#allocation3], 1
    %1302 = vsyncpa [#allocation6], 1
    %1303 = vsyncpa [#allocation9], 1
    %1304 = vsyncpa [#allocation4], 1

</llo_original>
